<compile_context>
chip_gen: v5e
topology: v5e:2x2
jax: 0.10.0
libtpu: 0.0.40
codegen_flags: <defaults>
</compile_context>

<pallas_src>
import jax
import jax.numpy as jnp
from jax.experimental import pallas as pl
from jax.experimental.pallas import tpu as pltpu

OUT_PAD = 128  # lane-dense output width (>= NUM_CLASSES)


# ---------------------------------------------------------------------------
# Pallas kernel
# ---------------------------------------------------------------------------
def _text_score_kernel(tri_ref,   # [bB, S, T]  int32  trigram token ids
                       tag_ref,   # [bB, L, 1]  int32  interacted-rate ids
                       w1f_ref,   # [T, V, T]   f32    trigram table folded into fc1
                       b1_ref,    # [1, T]      f32
                       w2af_ref,  # [V, H]      f32    rate table folded into fc2[:H]
                       w2b_ref,   # [T, H]      f32    fc2 rows acting on trigram feats
                       b2_ref,    # [1, H]      f32
                       w3p_ref,   # [H, 128]    f32    fc3 weight, lane-padded
                       b3p_ref,   # [1, 128]    f32    fc3 bias, lane-padded
                       out_ref):  # [bB, 128]   f32
    f32 = jnp.float32
    b_blk, seq, tdim = tri_ref.shape
    ltag = tag_ref.shape[1]
    vocab = w2af_ref.shape[0]
    t_out = w1f_ref.shape[2]

    # ---- trigram branch ---------------------------------------------------
    # mean_s(tri_emb) @ W1  ==  (1/S) * sum_t counts_t @ (table @ W1_block_t)
    tri = tri_ref[...]                                             # [bB, S, T]
    lane_v = jax.lax.broadcasted_iota(jnp.int32, (b_blk, seq, vocab), 2)
    h1 = jnp.zeros((b_blk, t_out), f32)
    for t in range(tdim):                       # static & tiny -> unrolled
        idx_t = tri[:, :, t:t + 1]                                 # [bB, S, 1]
        oh = jnp.where(idx_t == lane_v, f32(1.0), f32(0.0))        # [bB, S, V]
        counts = jnp.sum(oh, axis=1)                               # [bB, V]
        h1 = h1 + jnp.dot(counts, w1f_ref[t],
                          preferred_element_type=f32)              # [bB, T]
    h1 = jnp.maximum(h1 * (1.0 / seq) + b1_ref[...], 0.0)          # fc1 + ReLU

    # ---- interacted-rate branch --------------------------------------------
    # mean_l(rate_emb[tags]) @ W2a == (1/L) * counts_tag @ (rate_table @ W2a)
    lane_vt = jax.lax.broadcasted_iota(jnp.int32, (b_blk, ltag, vocab), 2)
    oh_tag = jnp.where(tag_ref[...] == lane_vt, f32(1.0), f32(0.0))  # [bB, L, V]
    counts_tag = jnp.sum(oh_tag, axis=1)                             # [bB, V]

    # ---- fc2 (concat folded into split matmul) + ReLU, then fc3 -------------
    h2 = (jnp.dot(counts_tag, w2af_ref[...], preferred_element_type=f32) * (1.0 / ltag)
          + jnp.dot(h1, w2b_ref[...], preferred_element_type=f32)
          + b2_ref[...])
    h2 = jnp.maximum(h2, 0.0)                                        # [bB, H]
    out_ref[...] = (jnp.dot(h2, w3p_ref[...], preferred_element_type=f32)
                    + b3p_ref[...])                                  # [bB, 128]


# ---------------------------------------------------------------------------
# Wrapper: batch grid, padding, lane-dense output
# ---------------------------------------------------------------------------
def _round_up(x, m):
    return ((x + m - 1) // m) * m


def trigram_text_score_pallas(tri_idx, tag_idx, kp, num_classes, *, block_b=512):
    """tri_idx: [B, S, T] int32 token ids; tag_idx: [B, L] int32 ids."""
    B, S, T = tri_idx.shape
    L = tag_idx.shape[1]
    V, H = kp["w2af"].shape
    out_pad = kp["w3p"].shape[1]

    # Batch block >= 128 fills the MXU M dim; shrink for tiny demo batches.
    # (block_b=512 fits comfortably in 32 MiB scoped VMEM on v5e/v6e/v7x;
    #  can be raised to 1024+ on v5e/v6e.)
    if B <= block_b:
        block_b = max(8, _round_up(B, 8))
    b_pad = _round_up(B, block_b)
    if b_pad != B:
        tri_idx = jnp.pad(tri_idx, ((0, b_pad - B), (0, 0), (0, 0)))
        tag_idx = jnp.pad(tag_idx, ((0, b_pad - B), (0, 0)))
    tag_idx = tag_idx[:, :, None]          # [B_pad, L, 1] (unit lane dim for one-hot)

    const2 = lambda b: (0, 0)
    const3 = lambda b: (0, 0, 0)
    out = pl.pallas_call(
        _text_score_kernel,
        out_shape=jax.ShapeDtypeStruct((b_pad, out_pad), jnp.float32),
        grid_spec=pltpu.PrefetchScalarGridSpec(
            num_scalar_prefetch=0,
            grid=(b_pad // block_b,),
            in_specs=[
                pl.BlockSpec((block_b, S, T), lambda b: (b, 0, 0)),   # trigram ids
                pl.BlockSpec((block_b, L, 1), lambda b: (b, 0, 0)),   # tag ids
                pl.BlockSpec((T, V, T), const3),      # w1f (table folded into fc1)
                pl.BlockSpec((1, T), const2),         # b1
                pl.BlockSpec((V, H), const2),         # w2af (table folded into fc2a)
                pl.BlockSpec((T, H), const2),         # w2b
                pl.BlockSpec((1, H), const2),         # b2
                pl.BlockSpec((H, out_pad), const2),   # fc3 weight (lane-padded)
                pl.BlockSpec((1, out_pad), const2),   # fc3 bias   (lane-padded)
            ],
            out_specs=pl.BlockSpec((block_b, out_pad), lambda b: (b, 0)),
        ),
        compiler_params=pltpu.CompilerParams(
            dimension_semantics=("parallel",),
            vmem_limit_bytes=32 * 1024 * 1024,
        ),
    )(tri_idx, tag_idx, kp["w1f"], kp["b1"], kp["w2af"], kp["w2b"],
      kp["b2"], kp["w3p"], kp["b3p"])
    return out[:B, :num_classes]


# ---------------------------------------------------------------------------
# Full forward (index prep only in plain JAX; all math inside the kernel)
# ---------------------------------------------------------------------------
def forward(items, raw_params, kernel_params):
    tri_idx = items["usr_trigram"].astype(jnp.int32)
    if tri_idx.ndim == 2:                  # mirrors trigram_embeds.dim() < 4 unsqueeze(1)
        tri_idx = tri_idx[:, None, :]
    tag_idx = items["usr_tags"].astype(jnp.int32)      # .type(torch.long)
    num_classes = raw_params["w3"].shape[1]
    return trigram_text_score_pallas(tri_idx, tag_idx, kernel_params, num_classes)


# ---------------------------------------------------------------------------
# Parameters
# ---------------------------------------------------------------------------
def init_params(key, vocab, emb_dim, trigram_dim, hidden_dim, num_classes):
    ks = jax.random.split(key, 8)
    s = 0.05
    trigram_emb = s * jax.random.normal(ks[0], (vocab, emb_dim), jnp.float32)
    rate_emb = s * jax.random.normal(ks[1], (vocab, emb_dim), jnp.float32)
    # torch Linear stores [out, in]; pre-transpose to [in, out].
    w1 = (s * jax.random.normal(ks[2], (trigram_dim, trigram_dim * emb_dim), jnp.float32)).T
    b1 = s * jax.random.normal(ks[3], (trigram_dim,), jnp.float32)
    w2 = (s * jax.random.normal(ks[4], (hidden_dim, trigram_dim + hidden_dim), jnp.float32)).T
    b2 = s * jax.random.normal(ks[5], (hidden_dim,), jnp.float32)
    w3 = (s * jax.random.normal(ks[6], (num_classes, hidden_dim), jnp.float32)).T
    b3 = s * jax.random.normal(ks[7], (num_classes,), jnp.float32)
    return {"trigram_emb": trigram_emb, "rate_emb": rate_emb,
            "w1": w1, "b1": b1, "w2": w2, "b2": b2, "w3": w3, "b3": b3}


def prepare_kernel_params(raw, out_pad=OUT_PAD):
    hp = jax.lax.Precision.HIGHEST
    tri_tbl = raw["trigram_emb"]                 # [V, E]
    rate_tbl = raw["rate_emb"]                   # [V, E]  (E == H)
    V, E = tri_tbl.shape
    TE, T = raw["w1"].shape                      # TE == T*E
    H = raw["w2"].shape[1]
    C = raw["w3"].shape[1]

    # Fold trigram table into fc1: w1f[t, v, j] = sum_e table[v, e] * w1[t*E + e, j]
    w1_r = raw["w1"].reshape(T, E, T)
    w1f = jnp.einsum("ve,tej->tvj", tri_tbl, w1_r, precision=hp)    # [T, V, T]

    # Split fc2 over the concat([ir_feat(H), tri_feat(T)]) boundary and fold
    # the rate table into the interacted half.
    w2a = raw["w2"][:H]                          # [H, H] (acts on interacted feats)
    w2b = raw["w2"][H:]                          # [T, H] (acts on trigram feats)
    w2af = jnp.dot(rate_tbl, w2a, precision=hp)  # [V, H]

    # Lane-pad fc3 to 128 output columns for dense stores.
    w3p = jnp.zeros((H, out_pad), jnp.float32).at[:, :C].set(raw["w3"])
    b3p = jnp.zeros((1, out_pad), jnp.float32).at[0, :C].set(raw["b3"])

    return {"w1f": w1f, "b1": raw["b1"].reshape(1, -1),
            "w2af": w2af, "w2b": w2b, "b2": raw["b2"].reshape(1, -1),
            "w3p": w3p, "b3p": b3p}


# ---------------------------------------------------------------------------
# Pure-JAX reference (mirrors the torch module exactly)
# ---------------------------------------------------------------------------
def forward_ref(items, raw):
    hp = jax.lax.Precision.HIGHEST
    tri_embeds = jnp.take(raw["trigram_emb"], items["usr_trigram"].astype(jnp.int32), axis=0)
    if tri_embeds.ndim < 4:
        tri_embeds = tri_embeds[:, None]
    tags = items["usr_tags"].astype(jnp.int32)
    inter = jnp.take(raw["rate_emb"], tags, axis=0)
    ir_feat = inter.mean(axis=1)
    B, S = tri_embeds.shape[0], tri_embeds.shape[1]
    tri_feat = tri_embeds.reshape(B, S, -1).mean(axis=1)
    h1 = jax.nn.relu(jnp.dot(tri_feat, raw["w1"], precision=hp) + raw["b1"])
    comb = jnp.concatenate([ir_feat, h1], axis=-1)
    h2 = jax.nn.relu(jnp.dot(comb, raw["w2"], precision=hp) + raw["b2"])
    return jnp.dot(h2, raw["w3"], precision=hp) + raw["b3"]


# ---------------------------------------------------------------------------
if __name__ == "__main__":
    VOCAB_SIZE = 50
    EMBEDDING_DIM = 32   # must equal HIDDEN_DIM for the torch module's shapes to line up
    HIDDEN_DIM = 32
    TRIGRAM_DIM = 8
    NUM_CLASSES = 5
    B, S, L = 2, 4, 8    # batch, trigram seq_len, tag seq_len

    key = jax.random.PRNGKey(0)
    kp_key, ki1, ki2, ki3, ki4 = jax.random.split(key, 5)
    raw = init_params(kp_key, VOCAB_SIZE, EMBEDDING_DIM, TRIGRAM_DIM, HIDDEN_DIM, NUM_CLASSES)
    kparams = prepare_kernel_params(raw)

    # Small batch (matches the module's example scale).
    items = {
        "usr_trigram": jax.random.randint(ki1, (B, S, TRIGRAM_DIM), 0, VOCAB_SIZE, jnp.int32),
        "usr_tags": jax.random.randint(ki2, (B, L), 0, VOCAB_SIZE, jnp.int32).astype(jnp.float32),
    }
    out = jax.block_until_ready(forward(items, raw, kparams))
    ref = forward_ref(items, raw)
    assert out.shape == (B, NUM_CLASSES), out.shape
    assert jnp.allclose(out, ref, atol=5e-5, rtol=5e-4), (out, ref)

    # Larger batch: exercises the batch grid (block_b=512, 3 grid steps) and padding.
    B2 = 1200
    items_big = {
        "usr_trigram": jax.random.randint(ki3, (B2, S, TRIGRAM_DIM), 0, VOCAB_SIZE, jnp.int32),
        "usr_tags": jax.random.randint(ki4, (B2, L), 0, VOCAB_SIZE, jnp.int32).astype(jnp.float32),
    }
    out2 = jax.block_until_ready(forward(items_big, raw, kparams))
    ref2 = forward_ref(items_big, raw)
    assert out2.shape == (B2, NUM_CLASSES), out2.shape
    assert jnp.allclose(out2, ref2, atol=5e-5, rtol=5e-4)

    print("KERNEL_OK")
</pallas_src>

<mosaic_0001>
module attributes {stable_mosaic.version = 11 : i64} {
  func.func @_text_score_kernel(%arg0: i32, %arg1: memref<8x4x8xi32, #tpu.memory_space<vmem>>, %arg2: memref<8x8x1xi32, #tpu.memory_space<vmem>>, %arg3: memref<8x50x8xf32, #tpu.memory_space<vmem>>, %arg4: memref<1x8xf32, #tpu.memory_space<vmem>>, %arg5: memref<50x32xf32, #tpu.memory_space<vmem>>, %arg6: memref<8x32xf32, #tpu.memory_space<vmem>>, %arg7: memref<1x32xf32, #tpu.memory_space<vmem>>, %arg8: memref<32x128xf32, #tpu.memory_space<vmem>>, %arg9: memref<1x128xf32, #tpu.memory_space<vmem>>, %arg10: memref<8x128xf32, #tpu.memory_space<vmem>>) attributes {dimension_semantics = [#tpu.dimension_semantics<parallel>], iteration_bounds = array<i64: 1>, scalar_prefetch = 0 : i64, scratch_operands = 0 : i64, tpu.core_type = #tpu.core_type<tc>, window_params = [{transform_indices = @transform_0, window_bounds = array<i64: 8, 4, 8>}, {transform_indices = @transform_1, window_bounds = array<i64: 8, 8, 1>}, {pipeline_mode = #tpu.pipeline_mode<synchronous>, transform_indices = @transform_2, window_bounds = array<i64: 8, 50, 8>}, {pipeline_mode = #tpu.pipeline_mode<synchronous>, transform_indices = @transform_3, window_bounds = array<i64: 1, 8>}, {pipeline_mode = #tpu.pipeline_mode<synchronous>, transform_indices = @transform_4, window_bounds = array<i64: 50, 32>}, {pipeline_mode = #tpu.pipeline_mode<synchronous>, transform_indices = @transform_5, window_bounds = array<i64: 8, 32>}, {pipeline_mode = #tpu.pipeline_mode<synchronous>, transform_indices = @transform_6, window_bounds = array<i64: 1, 32>}, {pipeline_mode = #tpu.pipeline_mode<synchronous>, transform_indices = @transform_7, window_bounds = array<i64: 32, 128>}, {pipeline_mode = #tpu.pipeline_mode<synchronous>, transform_indices = @transform_8, window_bounds = array<i64: 1, 128>}, {transform_indices = @transform_9, window_bounds = array<i64: 8, 128>}]} {
    %c0 = arith.constant 0 : index
    %c0_0 = arith.constant 0 : index
    %c0_1 = arith.constant 0 : index
    %0 = vector.load %arg1[%c0, %c0_0, %c0_1] : memref<8x4x8xi32, #tpu.memory_space<vmem>>, vector<8x4x8xi32>
    %1 = tpu.iota {dimensions = array<i32: 2>} : vector<8x4x50xi32>
    %cst = arith.constant 0.000000e+00 : f32
    %2 = vector.broadcast %cst : f32 to vector<8x8xf32>
    %3 = vector.extract_strided_slice %0 {offsets = [0, 0, 0], sizes = [8, 4, 1], strides = [1, 1, 1]} : vector<8x4x8xi32> to vector<8x4x1xi32>
    %4 = vector.broadcast %3 : vector<8x4x1xi32> to vector<8x4x50xi32>
    %5 = arith.cmpi eq, %4, %1 : vector<8x4x50xi32>
    %cst_2 = arith.constant 1.000000e+00 : f32
    %cst_3 = arith.constant 0.000000e+00 : f32
    %6 = vector.broadcast %cst_2 : f32 to vector<8x4x50xf32>
    %7 = vector.broadcast %cst_3 : f32 to vector<8x4x50xf32>
    %8 = arith.select %5, %6, %7 : vector<8x4x50xi1>, vector<8x4x50xf32>
    %cst_4 = arith.constant dense<0.000000e+00> : vector<8x50xf32>
    %9 = vector.multi_reduction <add>, %8, %cst_4 [1] : vector<8x4x50xf32> to vector<8x50xf32>
    %c0_5 = arith.constant 0 : index
    %c0_6 = arith.constant 0 : index
    %c0_7 = arith.constant 0 : index
    %10 = vector.load %arg3[%c0_5, %c0_6, %c0_7] : memref<8x50x8xf32, #tpu.memory_space<vmem>>, vector<1x50x8xf32>
    %11 = vector.shape_cast %10 : vector<1x50x8xf32> to vector<50x8xf32>
    %cst_8 = arith.constant dense<0.000000e+00> : vector<8x8xf32>
    %12 = tpu.matmul %9, %11, %cst_8 {dimension_numbers = #tpu.dot_dimension_numbers<[1], [0], [0], [1], [0, 0, 1, 1], [], []>} : vector<8x50xf32>, vector<50x8xf32>, vector<8x8xf32> -> vector<8x8xf32>
    %13 = arith.addf %2, %12 : vector<8x8xf32>
    %14 = vector.extract_strided_slice %0 {offsets = [0, 0, 1], sizes = [8, 4, 1], strides = [1, 1, 1]} : vector<8x4x8xi32> to vector<8x4x1xi32>
    %15 = vector.broadcast %14 : vector<8x4x1xi32> to vector<8x4x50xi32>
    %16 = arith.cmpi eq, %15, %1 : vector<8x4x50xi32>
    %cst_9 = arith.constant 1.000000e+00 : f32
    %cst_10 = arith.constant 0.000000e+00 : f32
    %17 = vector.broadcast %cst_9 : f32 to vector<8x4x50xf32>
    %18 = vector.broadcast %cst_10 : f32 to vector<8x4x50xf32>
    %19 = arith.select %16, %17, %18 : vector<8x4x50xi1>, vector<8x4x50xf32>
    %cst_11 = arith.constant dense<0.000000e+00> : vector<8x50xf32>
    %20 = vector.multi_reduction <add>, %19, %cst_11 [1] : vector<8x4x50xf32> to vector<8x50xf32>
    %c1 = arith.constant 1 : index
    %c0_12 = arith.constant 0 : index
    %c0_13 = arith.constant 0 : index
    %21 = vector.load %arg3[%c1, %c0_12, %c0_13] : memref<8x50x8xf32, #tpu.memory_space<vmem>>, vector<1x50x8xf32>
    %22 = vector.shape_cast %21 : vector<1x50x8xf32> to vector<50x8xf32>
    %cst_14 = arith.constant dense<0.000000e+00> : vector<8x8xf32>
    %23 = tpu.matmul %20, %22, %cst_14 {dimension_numbers = #tpu.dot_dimension_numbers<[1], [0], [0], [1], [0, 0, 1, 1], [], []>} : vector<8x50xf32>, vector<50x8xf32>, vector<8x8xf32> -> vector<8x8xf32>
    %24 = arith.addf %13, %23 : vector<8x8xf32>
    %25 = vector.extract_strided_slice %0 {offsets = [0, 0, 2], sizes = [8, 4, 1], strides = [1, 1, 1]} : vector<8x4x8xi32> to vector<8x4x1xi32>
    %26 = vector.broadcast %25 : vector<8x4x1xi32> to vector<8x4x50xi32>
    %27 = arith.cmpi eq, %26, %1 : vector<8x4x50xi32>
    %cst_15 = arith.constant 1.000000e+00 : f32
    %cst_16 = arith.constant 0.000000e+00 : f32
    %28 = vector.broadcast %cst_15 : f32 to vector<8x4x50xf32>
    %29 = vector.broadcast %cst_16 : f32 to vector<8x4x50xf32>
    %30 = arith.select %27, %28, %29 : vector<8x4x50xi1>, vector<8x4x50xf32>
    %cst_17 = arith.constant dense<0.000000e+00> : vector<8x50xf32>
    %31 = vector.multi_reduction <add>, %30, %cst_17 [1] : vector<8x4x50xf32> to vector<8x50xf32>
    %c2 = arith.constant 2 : index
    %c0_18 = arith.constant 0 : index
    %c0_19 = arith.constant 0 : index
    %32 = vector.load %arg3[%c2, %c0_18, %c0_19] : memref<8x50x8xf32, #tpu.memory_space<vmem>>, vector<1x50x8xf32>
    %33 = vector.shape_cast %32 : vector<1x50x8xf32> to vector<50x8xf32>
    %cst_20 = arith.constant dense<0.000000e+00> : vector<8x8xf32>
    %34 = tpu.matmul %31, %33, %cst_20 {dimension_numbers = #tpu.dot_dimension_numbers<[1], [0], [0], [1], [0, 0, 1, 1], [], []>} : vector<8x50xf32>, vector<50x8xf32>, vector<8x8xf32> -> vector<8x8xf32>
    %35 = arith.addf %24, %34 : vector<8x8xf32>
    %36 = vector.extract_strided_slice %0 {offsets = [0, 0, 3], sizes = [8, 4, 1], strides = [1, 1, 1]} : vector<8x4x8xi32> to vector<8x4x1xi32>
    %37 = vector.broadcast %36 : vector<8x4x1xi32> to vector<8x4x50xi32>
    %38 = arith.cmpi eq, %37, %1 : vector<8x4x50xi32>
    %cst_21 = arith.constant 1.000000e+00 : f32
    %cst_22 = arith.constant 0.000000e+00 : f32
    %39 = vector.broadcast %cst_21 : f32 to vector<8x4x50xf32>
    %40 = vector.broadcast %cst_22 : f32 to vector<8x4x50xf32>
    %41 = arith.select %38, %39, %40 : vector<8x4x50xi1>, vector<8x4x50xf32>
    %cst_23 = arith.constant dense<0.000000e+00> : vector<8x50xf32>
    %42 = vector.multi_reduction <add>, %41, %cst_23 [1] : vector<8x4x50xf32> to vector<8x50xf32>
    %c3 = arith.constant 3 : index
    %c0_24 = arith.constant 0 : index
    %c0_25 = arith.constant 0 : index
    %43 = vector.load %arg3[%c3, %c0_24, %c0_25] : memref<8x50x8xf32, #tpu.memory_space<vmem>>, vector<1x50x8xf32>
    %44 = vector.shape_cast %43 : vector<1x50x8xf32> to vector<50x8xf32>
    %cst_26 = arith.constant dense<0.000000e+00> : vector<8x8xf32>
    %45 = tpu.matmul %42, %44, %cst_26 {dimension_numbers = #tpu.dot_dimension_numbers<[1], [0], [0], [1], [0, 0, 1, 1], [], []>} : vector<8x50xf32>, vector<50x8xf32>, vector<8x8xf32> -> vector<8x8xf32>
    %46 = arith.addf %35, %45 : vector<8x8xf32>
    %47 = vector.extract_strided_slice %0 {offsets = [0, 0, 4], sizes = [8, 4, 1], strides = [1, 1, 1]} : vector<8x4x8xi32> to vector<8x4x1xi32>
    %48 = vector.broadcast %47 : vector<8x4x1xi32> to vector<8x4x50xi32>
    %49 = arith.cmpi eq, %48, %1 : vector<8x4x50xi32>
    %cst_27 = arith.constant 1.000000e+00 : f32
    %cst_28 = arith.constant 0.000000e+00 : f32
    %50 = vector.broadcast %cst_27 : f32 to vector<8x4x50xf32>
    %51 = vector.broadcast %cst_28 : f32 to vector<8x4x50xf32>
    %52 = arith.select %49, %50, %51 : vector<8x4x50xi1>, vector<8x4x50xf32>
    %cst_29 = arith.constant dense<0.000000e+00> : vector<8x50xf32>
    %53 = vector.multi_reduction <add>, %52, %cst_29 [1] : vector<8x4x50xf32> to vector<8x50xf32>
    %c4 = arith.constant 4 : index
    %c0_30 = arith.constant 0 : index
    %c0_31 = arith.constant 0 : index
    %54 = vector.load %arg3[%c4, %c0_30, %c0_31] : memref<8x50x8xf32, #tpu.memory_space<vmem>>, vector<1x50x8xf32>
    %55 = vector.shape_cast %54 : vector<1x50x8xf32> to vector<50x8xf32>
    %cst_32 = arith.constant dense<0.000000e+00> : vector<8x8xf32>
    %56 = tpu.matmul %53, %55, %cst_32 {dimension_numbers = #tpu.dot_dimension_numbers<[1], [0], [0], [1], [0, 0, 1, 1], [], []>} : vector<8x50xf32>, vector<50x8xf32>, vector<8x8xf32> -> vector<8x8xf32>
    %57 = arith.addf %46, %56 : vector<8x8xf32>
    %58 = vector.extract_strided_slice %0 {offsets = [0, 0, 5], sizes = [8, 4, 1], strides = [1, 1, 1]} : vector<8x4x8xi32> to vector<8x4x1xi32>
    %59 = vector.broadcast %58 : vector<8x4x1xi32> to vector<8x4x50xi32>
    %60 = arith.cmpi eq, %59, %1 : vector<8x4x50xi32>
    %cst_33 = arith.constant 1.000000e+00 : f32
    %cst_34 = arith.constant 0.000000e+00 : f32
    %61 = vector.broadcast %cst_33 : f32 to vector<8x4x50xf32>
    %62 = vector.broadcast %cst_34 : f32 to vector<8x4x50xf32>
    %63 = arith.select %60, %61, %62 : vector<8x4x50xi1>, vector<8x4x50xf32>
    %cst_35 = arith.constant dense<0.000000e+00> : vector<8x50xf32>
    %64 = vector.multi_reduction <add>, %63, %cst_35 [1] : vector<8x4x50xf32> to vector<8x50xf32>
    %c5 = arith.constant 5 : index
    %c0_36 = arith.constant 0 : index
    %c0_37 = arith.constant 0 : index
    %65 = vector.load %arg3[%c5, %c0_36, %c0_37] : memref<8x50x8xf32, #tpu.memory_space<vmem>>, vector<1x50x8xf32>
    %66 = vector.shape_cast %65 : vector<1x50x8xf32> to vector<50x8xf32>
    %cst_38 = arith.constant dense<0.000000e+00> : vector<8x8xf32>
    %67 = tpu.matmul %64, %66, %cst_38 {dimension_numbers = #tpu.dot_dimension_numbers<[1], [0], [0], [1], [0, 0, 1, 1], [], []>} : vector<8x50xf32>, vector<50x8xf32>, vector<8x8xf32> -> vector<8x8xf32>
    %68 = arith.addf %57, %67 : vector<8x8xf32>
    %69 = vector.extract_strided_slice %0 {offsets = [0, 0, 6], sizes = [8, 4, 1], strides = [1, 1, 1]} : vector<8x4x8xi32> to vector<8x4x1xi32>
    %70 = vector.broadcast %69 : vector<8x4x1xi32> to vector<8x4x50xi32>
    %71 = arith.cmpi eq, %70, %1 : vector<8x4x50xi32>
    %cst_39 = arith.constant 1.000000e+00 : f32
    %cst_40 = arith.constant 0.000000e+00 : f32
    %72 = vector.broadcast %cst_39 : f32 to vector<8x4x50xf32>
    %73 = vector.broadcast %cst_40 : f32 to vector<8x4x50xf32>
    %74 = arith.select %71, %72, %73 : vector<8x4x50xi1>, vector<8x4x50xf32>
    %cst_41 = arith.constant dense<0.000000e+00> : vector<8x50xf32>
    %75 = vector.multi_reduction <add>, %74, %cst_41 [1] : vector<8x4x50xf32> to vector<8x50xf32>
    %c6 = arith.constant 6 : index
    %c0_42 = arith.constant 0 : index
    %c0_43 = arith.constant 0 : index
    %76 = vector.load %arg3[%c6, %c0_42, %c0_43] : memref<8x50x8xf32, #tpu.memory_space<vmem>>, vector<1x50x8xf32>
    %77 = vector.shape_cast %76 : vector<1x50x8xf32> to vector<50x8xf32>
    %cst_44 = arith.constant dense<0.000000e+00> : vector<8x8xf32>
    %78 = tpu.matmul %75, %77, %cst_44 {dimension_numbers = #tpu.dot_dimension_numbers<[1], [0], [0], [1], [0, 0, 1, 1], [], []>} : vector<8x50xf32>, vector<50x8xf32>, vector<8x8xf32> -> vector<8x8xf32>
    %79 = arith.addf %68, %78 : vector<8x8xf32>
    %80 = vector.extract_strided_slice %0 {offsets = [0, 0, 7], sizes = [8, 4, 1], strides = [1, 1, 1]} : vector<8x4x8xi32> to vector<8x4x1xi32>
    %81 = vector.broadcast %80 : vector<8x4x1xi32> to vector<8x4x50xi32>
    %82 = arith.cmpi eq, %81, %1 : vector<8x4x50xi32>
    %cst_45 = arith.constant 1.000000e+00 : f32
    %cst_46 = arith.constant 0.000000e+00 : f32
    %83 = vector.broadcast %cst_45 : f32 to vector<8x4x50xf32>
    %84 = vector.broadcast %cst_46 : f32 to vector<8x4x50xf32>
    %85 = arith.select %82, %83, %84 : vector<8x4x50xi1>, vector<8x4x50xf32>
    %cst_47 = arith.constant dense<0.000000e+00> : vector<8x50xf32>
    %86 = vector.multi_reduction <add>, %85, %cst_47 [1] : vector<8x4x50xf32> to vector<8x50xf32>
    %c7 = arith.constant 7 : index
    %c0_48 = arith.constant 0 : index
    %c0_49 = arith.constant 0 : index
    %87 = vector.load %arg3[%c7, %c0_48, %c0_49] : memref<8x50x8xf32, #tpu.memory_space<vmem>>, vector<1x50x8xf32>
    %88 = vector.shape_cast %87 : vector<1x50x8xf32> to vector<50x8xf32>
    %cst_50 = arith.constant dense<0.000000e+00> : vector<8x8xf32>
    %89 = tpu.matmul %86, %88, %cst_50 {dimension_numbers = #tpu.dot_dimension_numbers<[1], [0], [0], [1], [0, 0, 1, 1], [], []>} : vector<8x50xf32>, vector<50x8xf32>, vector<8x8xf32> -> vector<8x8xf32>
    %90 = arith.addf %79, %89 : vector<8x8xf32>
    %cst_51 = arith.constant 2.500000e-01 : f32
    %91 = vector.broadcast %cst_51 : f32 to vector<8x8xf32>
    %92 = arith.mulf %90, %91 : vector<8x8xf32>
    %c0_52 = arith.constant 0 : index
    %c0_53 = arith.constant 0 : index
    %93 = vector.load %arg4[%c0_52, %c0_53] : memref<1x8xf32, #tpu.memory_space<vmem>>, vector<1x8xf32>
    %94 = vector.broadcast %93 : vector<1x8xf32> to vector<8x8xf32>
    %95 = arith.addf %92, %94 : vector<8x8xf32>
    %cst_54 = arith.constant 0.000000e+00 : f32
    %96 = vector.broadcast %cst_54 : f32 to vector<8x8xf32>
    %97 = arith.maximumf %95, %96 : vector<8x8xf32>
    %98 = tpu.iota {dimensions = array<i32: 2>} : vector<8x8x50xi32>
    %c0_55 = arith.constant 0 : index
    %c0_56 = arith.constant 0 : index
    %c0_57 = arith.constant 0 : index
    %99 = vector.load %arg2[%c0_55, %c0_56, %c0_57] : memref<8x8x1xi32, #tpu.memory_space<vmem>>, vector<8x8x1xi32>
    %100 = vector.broadcast %99 : vector<8x8x1xi32> to vector<8x8x50xi32>
    %101 = arith.cmpi eq, %100, %98 : vector<8x8x50xi32>
    %cst_58 = arith.constant 1.000000e+00 : f32
    %cst_59 = arith.constant 0.000000e+00 : f32
    %102 = vector.broadcast %cst_58 : f32 to vector<8x8x50xf32>
    %103 = vector.broadcast %cst_59 : f32 to vector<8x8x50xf32>
    %104 = arith.select %101, %102, %103 : vector<8x8x50xi1>, vector<8x8x50xf32>
    %cst_60 = arith.constant dense<0.000000e+00> : vector<8x50xf32>
    %105 = vector.multi_reduction <add>, %104, %cst_60 [1] : vector<8x8x50xf32> to vector<8x50xf32>
    %c0_61 = arith.constant 0 : index
    %c0_62 = arith.constant 0 : index
    %106 = vector.load %arg5[%c0_61, %c0_62] : memref<50x32xf32, #tpu.memory_space<vmem>>, vector<50x32xf32>
    %cst_63 = arith.constant dense<0.000000e+00> : vector<8x32xf32>
    %107 = tpu.matmul %105, %106, %cst_63 {dimension_numbers = #tpu.dot_dimension_numbers<[1], [0], [0], [1], [0, 0, 1, 1], [], []>} : vector<8x50xf32>, vector<50x32xf32>, vector<8x32xf32> -> vector<8x32xf32>
    %cst_64 = arith.constant 1.250000e-01 : f32
    %108 = vector.broadcast %cst_64 : f32 to vector<8x32xf32>
    %109 = arith.mulf %107, %108 : vector<8x32xf32>
    %c0_65 = arith.constant 0 : index
    %c0_66 = arith.constant 0 : index
    %110 = vector.load %arg6[%c0_65, %c0_66] : memref<8x32xf32, #tpu.memory_space<vmem>>, vector<8x32xf32>
    %cst_67 = arith.constant dense<0.000000e+00> : vector<8x32xf32>
    %111 = tpu.matmul %97, %110, %cst_67 {dimension_numbers = #tpu.dot_dimension_numbers<[1], [0], [0], [1], [0, 0, 1, 1], [], []>} : vector<8x8xf32>, vector<8x32xf32>, vector<8x32xf32> -> vector<8x32xf32>
    %112 = arith.addf %109, %111 : vector<8x32xf32>
    %c0_68 = arith.constant 0 : index
    %c0_69 = arith.constant 0 : index
    %113 = vector.load %arg7[%c0_68, %c0_69] : memref<1x32xf32, #tpu.memory_space<vmem>>, vector<1x32xf32>
    %114 = vector.broadcast %113 : vector<1x32xf32> to vector<8x32xf32>
    %115 = arith.addf %112, %114 : vector<8x32xf32>
    %cst_70 = arith.constant 0.000000e+00 : f32
    %116 = vector.broadcast %cst_70 : f32 to vector<8x32xf32>
    %117 = arith.maximumf %115, %116 : vector<8x32xf32>
    %c0_71 = arith.constant 0 : index
    %c0_72 = arith.constant 0 : index
    %118 = vector.load %arg8[%c0_71, %c0_72] : memref<32x128xf32, #tpu.memory_space<vmem>>, vector<32x128xf32>
    %cst_73 = arith.constant dense<0.000000e+00> : vector<8x128xf32>
    %119 = tpu.matmul %117, %118, %cst_73 {dimension_numbers = #tpu.dot_dimension_numbers<[1], [0], [0], [1], [0, 0, 1, 1], [], []>} : vector<8x32xf32>, vector<32x128xf32>, vector<8x128xf32> -> vector<8x128xf32>
    %c0_74 = arith.constant 0 : index
    %c0_75 = arith.constant 0 : index
    %120 = vector.load %arg9[%c0_74, %c0_75] : memref<1x128xf32, #tpu.memory_space<vmem>>, vector<1x128xf32>
    %121 = vector.broadcast %120 : vector<1x128xf32> to vector<8x128xf32>
    %122 = arith.addf %119, %121 : vector<8x128xf32>
    %c0_76 = arith.constant 0 : index
    %c0_77 = arith.constant 0 : index
    %123 = vector.load %arg10[%c0_76, %c0_77] : memref<8x128xf32, #tpu.memory_space<vmem>>, vector<8x128xf32>
    tpu.vector_store %arg10[%c0_76, %c0_77], %122 {strides = array<i32>} : memref<8x128xf32, #tpu.memory_space<vmem>>, vector<8x128xf32>,
    return
  }
  func.func @transform_0(%arg0: i32) -> (i32, i32, i32) {
    %c0_i32 = arith.constant 0 : i32
    %c0_i32_0 = arith.constant 0 : i32
    %c0_i32_1 = arith.constant 0 : i32
    return %arg0, %c0_i32, %c0_i32_0 : i32, i32, i32
  }
  func.func @transform_1(%arg0: i32) -> (i32, i32, i32) {
    %c0_i32 = arith.constant 0 : i32
    %c0_i32_0 = arith.constant 0 : i32
    %c0_i32_1 = arith.constant 0 : i32
    return %arg0, %c0_i32, %c0_i32_0 : i32, i32, i32
  }
  func.func @transform_2(%arg0: i32) -> (i32, i32, i32) {
    %c0_i32 = arith.constant 0 : i32
    %c0_i32_0 = arith.constant 0 : i32
    %c0_i32_1 = arith.constant 0 : i32
    %c0_i32_2 = arith.constant 0 : i32
    return %c0_i32, %c0_i32_0, %c0_i32_1 : i32, i32, i32
  }
  func.func @transform_3(%arg0: i32) -> (i32, i32) {
    %c0_i32 = arith.constant 0 : i32
    %c0_i32_0 = arith.constant 0 : i32
    %c0_i32_1 = arith.constant 0 : i32
    return %c0_i32, %c0_i32_0 : i32, i32
  }
  func.func @transform_4(%arg0: i32) -> (i32, i32) {
    %c0_i32 = arith.constant 0 : i32
    %c0_i32_0 = arith.constant 0 : i32
    %c0_i32_1 = arith.constant 0 : i32
    return %c0_i32, %c0_i32_0 : i32, i32
  }
  func.func @transform_5(%arg0: i32) -> (i32, i32) {
    %c0_i32 = arith.constant 0 : i32
    %c0_i32_0 = arith.constant 0 : i32
    %c0_i32_1 = arith.constant 0 : i32
    return %c0_i32, %c0_i32_0 : i32, i32
  }
  func.func @transform_6(%arg0: i32) -> (i32, i32) {
    %c0_i32 = arith.constant 0 : i32
    %c0_i32_0 = arith.constant 0 : i32
    %c0_i32_1 = arith.constant 0 : i32
    return %c0_i32, %c0_i32_0 : i32, i32
  }
  func.func @transform_7(%arg0: i32) -> (i32, i32) {
    %c0_i32 = arith.constant 0 : i32
    %c0_i32_0 = arith.constant 0 : i32
    %c0_i32_1 = arith.constant 0 : i32
    return %c0_i32, %c0_i32_0 : i32, i32
  }
  func.func @transform_8(%arg0: i32) -> (i32, i32) {
    %c0_i32 = arith.constant 0 : i32
    %c0_i32_0 = arith.constant 0 : i32
    %c0_i32_1 = arith.constant 0 : i32
    return %c0_i32, %c0_i32_0 : i32, i32
  }
  func.func @transform_9(%arg0: i32) -> (i32, i32) {
    %c0_i32 = arith.constant 0 : i32
    %c0_i32_0 = arith.constant 0 : i32
    return %arg0, %c0_i32 : i32, i32
  }
}

</mosaic_0001>

<llo_original>
// kernel: tpu_custom_call.1
$region0: #{tpu_custom_call.1}
  #allocation0 [shape = 'u32[]', space=smem, size = 0x4, offset = 0x4, fixed_abs, tag = 'smem constant byte address 0x4 - core index']
  #allocation1 [shape = 'u32[72,128]{1,0:T(1,128)}', space=vmem, size = 0x9000, scoped, tag = 'internal scratch']
  %s0 = inlined_call_operand.vmem [shape: s32[8,4,8], index: 0, kind: input, shape index: {}]
  %s1 = inlined_call_operand.vmem [shape: s32[8,8,1], index: 1, kind: input, shape index: {}]
  %s2 = inlined_call_operand.vmem [shape: f32[8,50,8], index: 2, kind: input, shape index: {}]
  %s3 = inlined_call_operand.vmem [shape: f32[1,8], index: 3, kind: input, shape index: {}]
  %s4 = inlined_call_operand.vmem [shape: f32[50,32], index: 4, kind: input, shape index: {}]
  %s5 = inlined_call_operand.vmem [shape: f32[8,32], index: 5, kind: input, shape index: {}]
  %s6 = inlined_call_operand.vmem [shape: f32[1,32], index: 6, kind: input, shape index: {}]
  %s7 = inlined_call_operand.vmem [shape: f32[32,128], index: 7, kind: input, shape index: {}]
  %s8 = inlined_call_operand.vmem [shape: f32[1,128], index: 8, kind: input, shape index: {}]
  %s9 = inlined_call_operand.hbm [shape: f32[8,128], index: 9, kind: output, shape index: {}]
  %s10 = sld [smem:[#allocation0]]
  $region46: #{tpu_custom_call.1} parent=0
    _
  %s12 = ssub.s32 1, %s10
  %s13 = scalar_select 0, %s12, %s10
  $region1: #{tpu_custom_call.1} parent=0
    #allocation2 [shape = 'u8[4096]{0}', space=vmem, size = 0x1000, scoped, tag = 'output window, operand 0, single buffered']
    #allocation3 [shape = 's32[1]{0}', space=sflag, size = 0x4, scoped, tag = 'scoped memory for tpu_custom_call.1']
    %14 = vsyncpa [#allocation3], 0
    // Predicated region
    $region2: #{tpu_custom_call.1} parent=1 // pred_check
      _
    $region3: #{tpu_custom_call.1} parent=1 // pred_check_branch
      %16 = sbr.rel (0) target = $region5
    $region4: #{tpu_custom_call.1} parent=1 // pred_region
      _
    $region5: #{tpu_custom_call.1} parent=1 // pred_fallthru
      _
    // Predicated region
    $region6: #{tpu_custom_call.1} parent=1 // pred_check
      _
    $region7: #{tpu_custom_call.1} parent=1 // pred_check_branch
      %18 = sbr.rel (0) target = $region9
    $region8: #{tpu_custom_call.1} parent=1 // pred_region
      _
    $region9: #{tpu_custom_call.1} parent=1 // pred_fallthru
      _
    // Predicated region
    $region10: #{tpu_custom_call.1} parent=1 // pred_check
      _
    $region11: #{tpu_custom_call.1} parent=1 // pred_check_branch
      %20 = sbr.rel (0) target = $region13
    $region12: #{tpu_custom_call.1} parent=1 // pred_region
      _
    $region13: #{tpu_custom_call.1} parent=1 // pred_fallthru
      _
    // Predicated region
    $region14: #{tpu_custom_call.1} parent=1 // pred_check
      _
    $region15: #{tpu_custom_call.1} parent=1 // pred_check_branch
      %22 = sbr.rel (0) target = $region17
    $region16: #{tpu_custom_call.1} parent=1 // pred_region
      _
    $region17: #{tpu_custom_call.1} parent=1 // pred_fallthru
      _
    // Predicated region
    $region18: #{tpu_custom_call.1} parent=1 // pred_check
      _
    $region19: #{tpu_custom_call.1} parent=1 // pred_check_branch
      %24 = sbr.rel (0) target = $region21
    $region20: #{tpu_custom_call.1} parent=1 // pred_region
      _
    $region21: #{tpu_custom_call.1} parent=1 // pred_fallthru
      _
    // Predicated region
    $region22: #{tpu_custom_call.1} parent=1 // pred_check
      _
    $region23: #{tpu_custom_call.1} parent=1 // pred_check_branch
      %26 = sbr.rel (0) target = $region25
    $region24: #{tpu_custom_call.1} parent=1 // pred_region
      _
    $region25: #{tpu_custom_call.1} parent=1 // pred_fallthru
      _
    // Predicated region
    $region26: #{tpu_custom_call.1} parent=1 // pred_check
      _
    $region27: #{tpu_custom_call.1} parent=1 // pred_check_branch
      %28 = sbr.rel (0) target = $region29
    $region28: #{tpu_custom_call.1} parent=1 // pred_region
      _
    $region29: #{tpu_custom_call.1} parent=1 // pred_fallthru
      _
    // Predicated region
    $region30: #{tpu_custom_call.1} parent=1 // pred_check
      _
    $region31: #{tpu_custom_call.1} parent=1 // pred_check_branch
      %30 = sbr.rel (0) target = $region33
    $region32: #{tpu_custom_call.1} parent=1 // pred_region
      _
    $region33: #{tpu_custom_call.1} parent=1 // pred_fallthru
      _
    // Predicated region
    $region34: #{tpu_custom_call.1} parent=1 // pred_check
      _
    $region35: #{tpu_custom_call.1} parent=1 // pred_check_branch
      %32 = sbr.rel (0) target = $region37
    $region36: #{tpu_custom_call.1} parent=1 // pred_region
      _
    $region37: #{tpu_custom_call.1} parent=1 // pred_fallthru
      _
    %v33 = vld [vmem:[%s0] sm:$0xf]
    %v34 = vld [vmem:[%s0 + $0x4] sm:$0xf]
    %v35 = vld [vmem:[%s0 + $0x8] sm:$0xf]
    %v36 = vld [vmem:[%s0 + $0xc] sm:$0xf]
    %v37 = vld [vmem:[%s0 + $0x10] sm:$0xf]
    %v38 = vld [vmem:[%s0 + $0x14] sm:$0xf]
    %v39 = vld [vmem:[%s0 + $0x18] sm:$0xf]
    %v40 = vld [vmem:[%s0 + $0x1c] sm:$0xf]
    %v41 = vlaneseq
    %v42 = vand.u32 %v41, 127
    %43 = vset.pattern.permute.xlu0 0
    %44 = vperm.xlu0 %43, %v33
    %v45 = vpop.permute.xlu0 %44
    %46 = vset.pattern.permute.xlu0 0
    %47 = vperm.xlu0 %46, %v34
    %v48 = vpop.permute.xlu0 %47
    %49 = vset.pattern.permute.xlu0 0
    %50 = vperm.xlu0 %49, %v35
    %v51 = vpop.permute.xlu0 %50
    %52 = vset.pattern.permute.xlu0 0
    %53 = vperm.xlu0 %52, %v36
    %v54 = vpop.permute.xlu0 %53
    %55 = vset.pattern.permute.xlu0 0
    %56 = vperm.xlu0 %55, %v37
    %v57 = vpop.permute.xlu0 %56
    %58 = vset.pattern.permute.xlu0 0
    %59 = vperm.xlu0 %58, %v38
    %v60 = vpop.permute.xlu0 %59
    %61 = vset.pattern.permute.xlu0 0
    %62 = vperm.xlu0 %61, %v39
    %v63 = vpop.permute.xlu0 %62
    %64 = vset.pattern.permute.xlu0 0
    %65 = vperm.xlu0 %64, %v40
    %v66 = vpop.permute.xlu0 %65
    %vm67 = vcmp.eq.s32.totalorder %v45, %v42
    %vm68 = vcmp.eq.s32.totalorder %v48, %v42
    %vm69 = vcmp.eq.s32.totalorder %v51, %v42
    %vm70 = vcmp.eq.s32.totalorder %v54, %v42
    %vm71 = vcmp.eq.s32.totalorder %v57, %v42
    %vm72 = vcmp.eq.s32.totalorder %v60, %v42
    %vm73 = vcmp.eq.s32.totalorder %v63, %v42
    %vm74 = vcmp.eq.s32.totalorder %v66, %v42
    %v75 = vsel %vm67, 1.0, 0.0
    %v76 = vsel %vm68, 1.0, 0.0
    %v77 = vsel %vm69, 1.0, 0.0
    %v78 = vsel %vm70, 1.0, 0.0
    %v79 = vsel %vm71, 1.0, 0.0
    %v80 = vsel %vm72, 1.0, 0.0
    %v81 = vsel %vm73, 1.0, 0.0
    %v82 = vsel %vm74, 1.0, 0.0
    %vm83 = vcmask 404480
    %v84 = vsel %vm83, %v75, 0.0
    %v85 = vrot.slane %v84, 4
    %v86 = vadd.f32 %v84, %v85
    %v87 = vrot.slane %v86, 2
    %v88 = vadd.f32 %v86, %v87
    %v89 = vrot.slane %v88, 1
    %v90 = vadd.f32 %v88, %v89
    %v91 = vsel %vm83, %v76, 0.0
    %v92 = vrot.slane %v91, 4
    %v93 = vadd.f32 %v91, %v92
    %v94 = vrot.slane %v93, 2
    %v95 = vadd.f32 %v93, %v94
    %v96 = vrot.slane %v95, 1
    %v97 = vadd.f32 %v95, %v96
    %v98 = vsel %vm83, %v77, 0.0
    %v99 = vrot.slane %v98, 4
    %v100 = vadd.f32 %v98, %v99
    %v101 = vrot.slane %v100, 2
    %v102 = vadd.f32 %v100, %v101
    %v103 = vrot.slane %v102, 1
    %v104 = vadd.f32 %v102, %v103
    %v105 = vsel %vm83, %v78, 0.0
    %v106 = vrot.slane %v105, 4
    %v107 = vadd.f32 %v105, %v106
    %v108 = vrot.slane %v107, 2
    %v109 = vadd.f32 %v107, %v108
    %v110 = vrot.slane %v109, 1
    %v111 = vadd.f32 %v109, %v110
    %v112 = vsel %vm83, %v79, 0.0
    %v113 = vrot.slane %v112, 4
    %v114 = vadd.f32 %v112, %v113
    %v115 = vrot.slane %v114, 2
    %v116 = vadd.f32 %v114, %v115
    %v117 = vrot.slane %v116, 1
    %v118 = vadd.f32 %v116, %v117
    %v119 = vsel %vm83, %v80, 0.0
    %v120 = vrot.slane %v119, 4
    %v121 = vadd.f32 %v119, %v120
    %v122 = vrot.slane %v121, 2
    %v123 = vadd.f32 %v121, %v122
    %v124 = vrot.slane %v123, 1
    %v125 = vadd.f32 %v123, %v124
    %v126 = vsel %vm83, %v81, 0.0
    %v127 = vrot.slane %v126, 4
    %v128 = vadd.f32 %v126, %v127
    %v129 = vrot.slane %v128, 2
    %v130 = vadd.f32 %v128, %v129
    %v131 = vrot.slane %v130, 1
    %v132 = vadd.f32 %v130, %v131
    %v133 = vsel %vm83, %v82, 0.0
    %v134 = vrot.slane %v133, 4
    %v135 = vadd.f32 %v133, %v134
    %v136 = vrot.slane %v135, 2
    %v137 = vadd.f32 %v135, %v136
    %v138 = vrot.slane %v137, 1
    %v139 = vadd.f32 %v137, %v138
    %v140 = vld [vmem:[%s2] sm:$0xff]
    %v141 = vld [vmem:[%s2 + $0x8] sm:$0xff]
    %v142 = vld [vmem:[%s2 + $0x10] sm:$0xff]
    %v143 = vld [vmem:[%s2 + $0x18] sm:$0xff]
    %v144 = vld [vmem:[%s2 + $0x20] sm:$0xff]
    %v145 = vld [vmem:[%s2 + $0x28] sm:$0xff]
    %v146 = vld [vmem:[%s2 + $0x30] sm:$0x3]
    %147 = vset.pattern.permute.xlu0 1
    %148 = vperm.xlu0 %147, %v33
    %v149 = vpop.permute.xlu0 %148
    %150 = vset.pattern.permute.xlu0 1
    %151 = vperm.xlu0 %150, %v34
    %v152 = vpop.permute.xlu0 %151
    %153 = vset.pattern.permute.xlu0 1
    %154 = vperm.xlu0 %153, %v35
    %v155 = vpop.permute.xlu0 %154
    %156 = vset.pattern.permute.xlu0 1
    %157 = vperm.xlu0 %156, %v36
    %v158 = vpop.permute.xlu0 %157
    %159 = vset.pattern.permute.xlu0 1
    %160 = vperm.xlu0 %159, %v37
    %v161 = vpop.permute.xlu0 %160
    %162 = vset.pattern.permute.xlu0 1
    %163 = vperm.xlu0 %162, %v38
    %v164 = vpop.permute.xlu0 %163
    %165 = vset.pattern.permute.xlu0 1
    %166 = vperm.xlu0 %165, %v39
    %v167 = vpop.permute.xlu0 %166
    %168 = vset.pattern.permute.xlu0 1
    %169 = vperm.xlu0 %168, %v40
    %v170 = vpop.permute.xlu0 %169
    %vm171 = vcmp.eq.s32.totalorder %v149, %v42
    %vm172 = vcmp.eq.s32.totalorder %v152, %v42
    %vm173 = vcmp.eq.s32.totalorder %v155, %v42
    %vm174 = vcmp.eq.s32.totalorder %v158, %v42
    %vm175 = vcmp.eq.s32.totalorder %v161, %v42
    %vm176 = vcmp.eq.s32.totalorder %v164, %v42
    %vm177 = vcmp.eq.s32.totalorder %v167, %v42
    %vm178 = vcmp.eq.s32.totalorder %v170, %v42
    %v179 = vsel %vm171, 1.0, 0.0
    %v180 = vsel %vm172, 1.0, 0.0
    %v181 = vsel %vm173, 1.0, 0.0
    %v182 = vsel %vm174, 1.0, 0.0
    %v183 = vsel %vm175, 1.0, 0.0
    %v184 = vsel %vm176, 1.0, 0.0
    %v185 = vsel %vm177, 1.0, 0.0
    %v186 = vsel %vm178, 1.0, 0.0
    %v187 = vsel %vm83, %v179, 0.0
    %v188 = vrot.slane %v187, 4
    %v189 = vadd.f32 %v187, %v188
    %v190 = vrot.slane %v189, 2
    %v191 = vadd.f32 %v189, %v190
    %v192 = vrot.slane %v191, 1
    %v193 = vadd.f32 %v191, %v192
    %v194 = vsel %vm83, %v180, 0.0
    %v195 = vrot.slane %v194, 4
    %v196 = vadd.f32 %v194, %v195
    %v197 = vrot.slane %v196, 2
    %v198 = vadd.f32 %v196, %v197
    %v199 = vrot.slane %v198, 1
    %v200 = vadd.f32 %v198, %v199
    %v201 = vsel %vm83, %v181, 0.0
    %v202 = vrot.slane %v201, 4
    %v203 = vadd.f32 %v201, %v202
    %v204 = vrot.slane %v203, 2
    %v205 = vadd.f32 %v203, %v204
    %v206 = vrot.slane %v205, 1
    %v207 = vadd.f32 %v205, %v206
    %v208 = vsel %vm83, %v182, 0.0
    %v209 = vrot.slane %v208, 4
    %v210 = vadd.f32 %v208, %v209
    %v211 = vrot.slane %v210, 2
    %v212 = vadd.f32 %v210, %v211
    %v213 = vrot.slane %v212, 1
    %v214 = vadd.f32 %v212, %v213
    %v215 = vsel %vm83, %v183, 0.0
    %v216 = vrot.slane %v215, 4
    %v217 = vadd.f32 %v215, %v216
    %v218 = vrot.slane %v217, 2
    %v219 = vadd.f32 %v217, %v218
    %v220 = vrot.slane %v219, 1
    %v221 = vadd.f32 %v219, %v220
    %v222 = vsel %vm83, %v184, 0.0
    %v223 = vrot.slane %v222, 4
    %v224 = vadd.f32 %v222, %v223
    %v225 = vrot.slane %v224, 2
    %v226 = vadd.f32 %v224, %v225
    %v227 = vrot.slane %v226, 1
    %v228 = vadd.f32 %v226, %v227
    %v229 = vsel %vm83, %v185, 0.0
    %v230 = vrot.slane %v229, 4
    %v231 = vadd.f32 %v229, %v230
    %v232 = vrot.slane %v231, 2
    %v233 = vadd.f32 %v231, %v232
    %v234 = vrot.slane %v233, 1
    %v235 = vadd.f32 %v233, %v234
    %v236 = vsel %vm83, %v186, 0.0
    %v237 = vrot.slane %v236, 4
    %v238 = vadd.f32 %v236, %v237
    %v239 = vrot.slane %v238, 2
    %v240 = vadd.f32 %v238, %v239
    %v241 = vrot.slane %v240, 1
    %v242 = vadd.f32 %v240, %v241
    %s243 = scalar_lea.vmem %s2, 56
    %v244 = vld [vmem:[%s243] sm:$0xff]
    %v245 = vld [vmem:[%s243 + $0x8] sm:$0xff]
    %v246 = vld [vmem:[%s243 + $0x10] sm:$0xff]
    %v247 = vld [vmem:[%s243 + $0x18] sm:$0xff]
    %v248 = vld [vmem:[%s243 + $0x20] sm:$0xff]
    %v249 = vld [vmem:[%s243 + $0x28] sm:$0xff]
    %v250 = vld [vmem:[%s243 + $0x30] sm:$0x3]
    %vm259 = vcmask 1041409
    %v260 = vsel %vm259, %v200, %v193
    %vm261 = vcmask 1042434
    %v262 = vsel %vm261, %v207, %v260
    %vm263 = vcmask 1043459
    %v264 = vsel %vm263, %v214, %v262
    %vm265 = vcmask 1044484
    %v266 = vsel %vm265, %v221, %v264
    %vm267 = vcmask 1045509
    %v268 = vsel %vm267, %v228, %v266
    %vm269 = vcmask 1046534
    %v270 = vsel %vm269, %v235, %v268
    %vm271 = vcmask 1047559
    %v272 = vsel %vm271, %v242, %v270
    %vm273 = vcmask 408576
    %v274 = vsel %vm273, %v272, 0
    %vm276 = vcmask 1041408
    %v278 = vsel %vm276, %v250, 0
    %280 = vmatpush.msra.mxu0 0.0
    %281 = vmatpush.msra.mxu0 0.0
    %282 = vmatpush.msra.mxu0 0.0
    %283 = vmatpush.msra.mxu0 0.0
    %284 = vmatpush.msra.mxu0 0.0
    %285 = vmatpush.msra.mxu0 0.0
    %286 = vmatpush.msra.mxu0 0.0
    %287 = vmatpush.msra.mxu0 0.0
    %288 = vmatpush.msra.mxu0 0.0
    %289 = vmatpush.msra.mxu0 %v278
    %290 = vmatpush.msra.mxu0 %v249
    %291 = vmatpush.msra.mxu0 %v248
    %292 = vmatpush.msra.mxu0 %v247
    %293 = vmatpush.msra.mxu0 %v246
    %294 = vmatpush.msra.mxu0 %v245
    %295 = vmatpush.msra.mxu0 %v244
    %296 = vmatmul.f32.gmra.mxu0 %v274
    %v297 = vpop.f32.mrf.mxu0
    %v298 = vadd.f32 0.0, %v297
    %299 = vdwg.mxu0
    %v308 = vsel %vm259, %v97, %v90
    %v309 = vsel %vm261, %v104, %v308
    %v310 = vsel %vm263, %v111, %v309
    %v311 = vsel %vm265, %v118, %v310
    %v312 = vsel %vm267, %v125, %v311
    %v313 = vsel %vm269, %v132, %v312
    %v314 = vsel %vm271, %v139, %v313
    %v315 = vsel %vm273, %v314, 0
    %v318 = vsel %vm276, %v146, 0
    %320 = vmatpush.msra.mxu0 0.0
    %321 = vmatpush.msra.mxu0 0.0
    %322 = vmatpush.msra.mxu0 0.0
    %323 = vmatpush.msra.mxu0 0.0
    %324 = vmatpush.msra.mxu0 0.0
    %325 = vmatpush.msra.mxu0 0.0
    %326 = vmatpush.msra.mxu0 0.0
    %327 = vmatpush.msra.mxu0 0.0
    %328 = vmatpush.msra.mxu0 0.0
    %329 = vmatpush.msra.mxu0 %v318
    %330 = vmatpush.msra.mxu0 %v145
    %331 = vmatpush.msra.mxu0 %v144
    %332 = vmatpush.msra.mxu0 %v143
    %333 = vmatpush.msra.mxu0 %v142
    %334 = vmatpush.msra.mxu0 %v141
    %335 = vmatpush.msra.mxu0 %v140
    %336 = vmatmul.f32.gmra.mxu0 %v315
    %v337 = vpop.f32.mrf.mxu0
    %v338 = vadd.f32 %v298, %v337
    %339 = vdwg.mxu0
    %340 = vset.pattern.permute.xlu0 2
    %341 = vperm.xlu0 %340, %v33
    %v342 = vpop.permute.xlu0 %341
    %343 = vset.pattern.permute.xlu0 2
    %344 = vperm.xlu0 %343, %v34
    %v345 = vpop.permute.xlu0 %344
    %346 = vset.pattern.permute.xlu0 2
    %347 = vperm.xlu0 %346, %v35
    %v348 = vpop.permute.xlu0 %347
    %349 = vset.pattern.permute.xlu0 2
    %350 = vperm.xlu0 %349, %v36
    %v351 = vpop.permute.xlu0 %350
    %352 = vset.pattern.permute.xlu0 2
    %353 = vperm.xlu0 %352, %v37
    %v354 = vpop.permute.xlu0 %353
    %355 = vset.pattern.permute.xlu0 2
    %356 = vperm.xlu0 %355, %v38
    %v357 = vpop.permute.xlu0 %356
    %358 = vset.pattern.permute.xlu0 2
    %359 = vperm.xlu0 %358, %v39
    %v360 = vpop.permute.xlu0 %359
    %361 = vset.pattern.permute.xlu0 2
    %362 = vperm.xlu0 %361, %v40
    %v363 = vpop.permute.xlu0 %362
    %vm364 = vcmp.eq.s32.totalorder %v342, %v42
    %vm365 = vcmp.eq.s32.totalorder %v345, %v42
    %vm366 = vcmp.eq.s32.totalorder %v348, %v42
    %vm367 = vcmp.eq.s32.totalorder %v351, %v42
    %vm368 = vcmp.eq.s32.totalorder %v354, %v42
    %vm369 = vcmp.eq.s32.totalorder %v357, %v42
    %vm370 = vcmp.eq.s32.totalorder %v360, %v42
    %vm371 = vcmp.eq.s32.totalorder %v363, %v42
    %v372 = vsel %vm364, 1.0, 0.0
    %v373 = vsel %vm365, 1.0, 0.0
    %v374 = vsel %vm366, 1.0, 0.0
    %v375 = vsel %vm367, 1.0, 0.0
    %v376 = vsel %vm368, 1.0, 0.0
    %v377 = vsel %vm369, 1.0, 0.0
    %v378 = vsel %vm370, 1.0, 0.0
    %v379 = vsel %vm371, 1.0, 0.0
    %v380 = vsel %vm83, %v372, 0.0
    %v381 = vrot.slane %v380, 4
    %v382 = vadd.f32 %v380, %v381
    %v383 = vrot.slane %v382, 2
    %v384 = vadd.f32 %v382, %v383
    %v385 = vrot.slane %v384, 1
    %v386 = vadd.f32 %v384, %v385
    %v387 = vsel %vm83, %v373, 0.0
    %v388 = vrot.slane %v387, 4
    %v389 = vadd.f32 %v387, %v388
    %v390 = vrot.slane %v389, 2
    %v391 = vadd.f32 %v389, %v390
    %v392 = vrot.slane %v391, 1
    %v393 = vadd.f32 %v391, %v392
    %v394 = vsel %vm83, %v374, 0.0
    %v395 = vrot.slane %v394, 4
    %v396 = vadd.f32 %v394, %v395
    %v397 = vrot.slane %v396, 2
    %v398 = vadd.f32 %v396, %v397
    %v399 = vrot.slane %v398, 1
    %v400 = vadd.f32 %v398, %v399
    %v401 = vsel %vm83, %v375, 0.0
    %v402 = vrot.slane %v401, 4
    %v403 = vadd.f32 %v401, %v402
    %v404 = vrot.slane %v403, 2
    %v405 = vadd.f32 %v403, %v404
    %v406 = vrot.slane %v405, 1
    %v407 = vadd.f32 %v405, %v406
    %v408 = vsel %vm83, %v376, 0.0
    %v409 = vrot.slane %v408, 4
    %v410 = vadd.f32 %v408, %v409
    %v411 = vrot.slane %v410, 2
    %v412 = vadd.f32 %v410, %v411
    %v413 = vrot.slane %v412, 1
    %v414 = vadd.f32 %v412, %v413
    %v415 = vsel %vm83, %v377, 0.0
    %v416 = vrot.slane %v415, 4
    %v417 = vadd.f32 %v415, %v416
    %v418 = vrot.slane %v417, 2
    %v419 = vadd.f32 %v417, %v418
    %v420 = vrot.slane %v419, 1
    %v421 = vadd.f32 %v419, %v420
    %v422 = vsel %vm83, %v378, 0.0
    %v423 = vrot.slane %v422, 4
    %v424 = vadd.f32 %v422, %v423
    %v425 = vrot.slane %v424, 2
    %v426 = vadd.f32 %v424, %v425
    %v427 = vrot.slane %v426, 1
    %v428 = vadd.f32 %v426, %v427
    %v429 = vsel %vm83, %v379, 0.0
    %v430 = vrot.slane %v429, 4
    %v431 = vadd.f32 %v429, %v430
    %v432 = vrot.slane %v431, 2
    %v433 = vadd.f32 %v431, %v432
    %v434 = vrot.slane %v433, 1
    %v435 = vadd.f32 %v433, %v434
    %s436 = scalar_lea.vmem %s2, 112
    %v437 = vld [vmem:[%s436] sm:$0xff]
    %v438 = vld [vmem:[%s436 + $0x8] sm:$0xff]
    %v439 = vld [vmem:[%s436 + $0x10] sm:$0xff]
    %v440 = vld [vmem:[%s436 + $0x18] sm:$0xff]
    %v441 = vld [vmem:[%s436 + $0x20] sm:$0xff]
    %v442 = vld [vmem:[%s436 + $0x28] sm:$0xff]
    %v443 = vld [vmem:[%s436 + $0x30] sm:$0x3]
    %v452 = vsel %vm259, %v393, %v386
    %v453 = vsel %vm261, %v400, %v452
    %v454 = vsel %vm263, %v407, %v453
    %v455 = vsel %vm265, %v414, %v454
    %v456 = vsel %vm267, %v421, %v455
    %v457 = vsel %vm269, %v428, %v456
    %v458 = vsel %vm271, %v435, %v457
    %v459 = vsel %vm273, %v458, 0
    %v462 = vsel %vm276, %v443, 0
    %464 = vmatpush.msra.mxu0 0.0
    %465 = vmatpush.msra.mxu0 0.0
    %466 = vmatpush.msra.mxu0 0.0
    %467 = vmatpush.msra.mxu0 0.0
    %468 = vmatpush.msra.mxu0 0.0
    %469 = vmatpush.msra.mxu0 0.0
    %470 = vmatpush.msra.mxu0 0.0
    %471 = vmatpush.msra.mxu0 0.0
    %472 = vmatpush.msra.mxu0 0.0
    %473 = vmatpush.msra.mxu0 %v462
    %474 = vmatpush.msra.mxu0 %v442
    %475 = vmatpush.msra.mxu0 %v441
    %476 = vmatpush.msra.mxu0 %v440
    %477 = vmatpush.msra.mxu0 %v439
    %478 = vmatpush.msra.mxu0 %v438
    %479 = vmatpush.msra.mxu0 %v437
    %480 = vmatmul.f32.gmra.mxu0 %v459
    %v481 = vpop.f32.mrf.mxu0
    %v482 = vadd.f32 0.0, %v481
    %483 = vdwg.mxu0
    %v484 = vadd.f32 %v338, %v482
    %485 = vset.pattern.permute.xlu0 3
    %486 = vperm.xlu0 %485, %v33
    %v487 = vpop.permute.xlu0 %486
    %488 = vset.pattern.permute.xlu0 3
    %489 = vperm.xlu0 %488, %v34
    %v490 = vpop.permute.xlu0 %489
    %491 = vset.pattern.permute.xlu0 3
    %492 = vperm.xlu0 %491, %v35
    %v493 = vpop.permute.xlu0 %492
    %494 = vset.pattern.permute.xlu0 3
    %495 = vperm.xlu0 %494, %v36
    %v496 = vpop.permute.xlu0 %495
    %497 = vset.pattern.permute.xlu0 3
    %498 = vperm.xlu0 %497, %v37
    %v499 = vpop.permute.xlu0 %498
    %500 = vset.pattern.permute.xlu0 3
    %501 = vperm.xlu0 %500, %v38
    %v502 = vpop.permute.xlu0 %501
    %503 = vset.pattern.permute.xlu0 3
    %504 = vperm.xlu0 %503, %v39
    %v505 = vpop.permute.xlu0 %504
    %506 = vset.pattern.permute.xlu0 3
    %507 = vperm.xlu0 %506, %v40
    %v508 = vpop.permute.xlu0 %507
    %vm509 = vcmp.eq.s32.totalorder %v487, %v42
    %vm510 = vcmp.eq.s32.totalorder %v490, %v42
    %vm511 = vcmp.eq.s32.totalorder %v493, %v42
    %vm512 = vcmp.eq.s32.totalorder %v496, %v42
    %vm513 = vcmp.eq.s32.totalorder %v499, %v42
    %vm514 = vcmp.eq.s32.totalorder %v502, %v42
    %vm515 = vcmp.eq.s32.totalorder %v505, %v42
    %vm516 = vcmp.eq.s32.totalorder %v508, %v42
    %v517 = vsel %vm509, 1.0, 0.0
    %v518 = vsel %vm510, 1.0, 0.0
    %v519 = vsel %vm511, 1.0, 0.0
    %v520 = vsel %vm512, 1.0, 0.0
    %v521 = vsel %vm513, 1.0, 0.0
    %v522 = vsel %vm514, 1.0, 0.0
    %v523 = vsel %vm515, 1.0, 0.0
    %v524 = vsel %vm516, 1.0, 0.0
    %v525 = vsel %vm83, %v517, 0.0
    %v526 = vrot.slane %v525, 4
    %v527 = vadd.f32 %v525, %v526
    %v528 = vrot.slane %v527, 2
    %v529 = vadd.f32 %v527, %v528
    %v530 = vrot.slane %v529, 1
    %v531 = vadd.f32 %v529, %v530
    %v532 = vsel %vm83, %v518, 0.0
    %v533 = vrot.slane %v532, 4
    %v534 = vadd.f32 %v532, %v533
    %v535 = vrot.slane %v534, 2
    %v536 = vadd.f32 %v534, %v535
    %v537 = vrot.slane %v536, 1
    %v538 = vadd.f32 %v536, %v537
    %v539 = vsel %vm83, %v519, 0.0
    %v540 = vrot.slane %v539, 4
    %v541 = vadd.f32 %v539, %v540
    %v542 = vrot.slane %v541, 2
    %v543 = vadd.f32 %v541, %v542
    %v544 = vrot.slane %v543, 1
    %v545 = vadd.f32 %v543, %v544
    %v546 = vsel %vm83, %v520, 0.0
    %v547 = vrot.slane %v546, 4
    %v548 = vadd.f32 %v546, %v547
    %v549 = vrot.slane %v548, 2
    %v550 = vadd.f32 %v548, %v549
    %v551 = vrot.slane %v550, 1
    %v552 = vadd.f32 %v550, %v551
    %v553 = vsel %vm83, %v521, 0.0
    %v554 = vrot.slane %v553, 4
    %v555 = vadd.f32 %v553, %v554
    %v556 = vrot.slane %v555, 2
    %v557 = vadd.f32 %v555, %v556
    %v558 = vrot.slane %v557, 1
    %v559 = vadd.f32 %v557, %v558
    %v560 = vsel %vm83, %v522, 0.0
    %v561 = vrot.slane %v560, 4
    %v562 = vadd.f32 %v560, %v561
    %v563 = vrot.slane %v562, 2
    %v564 = vadd.f32 %v562, %v563
    %v565 = vrot.slane %v564, 1
    %v566 = vadd.f32 %v564, %v565
    %v567 = vsel %vm83, %v523, 0.0
    %v568 = vrot.slane %v567, 4
    %v569 = vadd.f32 %v567, %v568
    %v570 = vrot.slane %v569, 2
    %v571 = vadd.f32 %v569, %v570
    %v572 = vrot.slane %v571, 1
    %v573 = vadd.f32 %v571, %v572
    %v574 = vsel %vm83, %v524, 0.0
    %v575 = vrot.slane %v574, 4
    %v576 = vadd.f32 %v574, %v575
    %v577 = vrot.slane %v576, 2
    %v578 = vadd.f32 %v576, %v577
    %v579 = vrot.slane %v578, 1
    %v580 = vadd.f32 %v578, %v579
    %s581 = scalar_lea.vmem %s2, 168
    %v582 = vld [vmem:[%s581] sm:$0xff]
    %v583 = vld [vmem:[%s581 + $0x8] sm:$0xff]
    %v584 = vld [vmem:[%s581 + $0x10] sm:$0xff]
    %v585 = vld [vmem:[%s581 + $0x18] sm:$0xff]
    %v586 = vld [vmem:[%s581 + $0x20] sm:$0xff]
    %v587 = vld [vmem:[%s581 + $0x28] sm:$0xff]
    %v588 = vld [vmem:[%s581 + $0x30] sm:$0x3]
    %v597 = vsel %vm259, %v538, %v531
    %v598 = vsel %vm261, %v545, %v597
    %v599 = vsel %vm263, %v552, %v598
    %v600 = vsel %vm265, %v559, %v599
    %v601 = vsel %vm267, %v566, %v600
    %v602 = vsel %vm269, %v573, %v601
    %v603 = vsel %vm271, %v580, %v602
    %v604 = vsel %vm273, %v603, 0
    %v607 = vsel %vm276, %v588, 0
    %609 = vmatpush.msra.mxu0 0.0
    %610 = vmatpush.msra.mxu0 0.0
    %611 = vmatpush.msra.mxu0 0.0
    %612 = vmatpush.msra.mxu0 0.0
    %613 = vmatpush.msra.mxu0 0.0
    %614 = vmatpush.msra.mxu0 0.0
    %615 = vmatpush.msra.mxu0 0.0
    %616 = vmatpush.msra.mxu0 0.0
    %617 = vmatpush.msra.mxu0 0.0
    %618 = vmatpush.msra.mxu0 %v607
    %619 = vmatpush.msra.mxu0 %v587
    %620 = vmatpush.msra.mxu0 %v586
    %621 = vmatpush.msra.mxu0 %v585
    %622 = vmatpush.msra.mxu0 %v584
    %623 = vmatpush.msra.mxu0 %v583
    %624 = vmatpush.msra.mxu0 %v582
    %625 = vmatmul.f32.gmra.mxu0 %v604
    %v626 = vpop.f32.mrf.mxu0
    %v627 = vadd.f32 0.0, %v626
    %628 = vdwg.mxu0
    %v629 = vadd.f32 %v484, %v627
    %630 = vset.pattern.permute.xlu0 4
    %631 = vperm.xlu0 %630, %v33
    %v632 = vpop.permute.xlu0 %631
    %633 = vset.pattern.permute.xlu0 4
    %634 = vperm.xlu0 %633, %v34
    %v635 = vpop.permute.xlu0 %634
    %636 = vset.pattern.permute.xlu0 4
    %637 = vperm.xlu0 %636, %v35
    %v638 = vpop.permute.xlu0 %637
    %639 = vset.pattern.permute.xlu0 4
    %640 = vperm.xlu0 %639, %v36
    %v641 = vpop.permute.xlu0 %640
    %642 = vset.pattern.permute.xlu0 4
    %643 = vperm.xlu0 %642, %v37
    %v644 = vpop.permute.xlu0 %643
    %645 = vset.pattern.permute.xlu0 4
    %646 = vperm.xlu0 %645, %v38
    %v647 = vpop.permute.xlu0 %646
    %648 = vset.pattern.permute.xlu0 4
    %649 = vperm.xlu0 %648, %v39
    %v650 = vpop.permute.xlu0 %649
    %651 = vset.pattern.permute.xlu0 4
    %652 = vperm.xlu0 %651, %v40
    %v653 = vpop.permute.xlu0 %652
    %vm654 = vcmp.eq.s32.totalorder %v632, %v42
    %vm655 = vcmp.eq.s32.totalorder %v635, %v42
    %vm656 = vcmp.eq.s32.totalorder %v638, %v42
    %vm657 = vcmp.eq.s32.totalorder %v641, %v42
    %vm658 = vcmp.eq.s32.totalorder %v644, %v42
    %vm659 = vcmp.eq.s32.totalorder %v647, %v42
    %vm660 = vcmp.eq.s32.totalorder %v650, %v42
    %vm661 = vcmp.eq.s32.totalorder %v653, %v42
    %v662 = vsel %vm654, 1.0, 0.0
    %v663 = vsel %vm655, 1.0, 0.0
    %v664 = vsel %vm656, 1.0, 0.0
    %v665 = vsel %vm657, 1.0, 0.0
    %v666 = vsel %vm658, 1.0, 0.0
    %v667 = vsel %vm659, 1.0, 0.0
    %v668 = vsel %vm660, 1.0, 0.0
    %v669 = vsel %vm661, 1.0, 0.0
    %v670 = vsel %vm83, %v662, 0.0
    %v671 = vrot.slane %v670, 4
    %v672 = vadd.f32 %v670, %v671
    %v673 = vrot.slane %v672, 2
    %v674 = vadd.f32 %v672, %v673
    %v675 = vrot.slane %v674, 1
    %v676 = vadd.f32 %v674, %v675
    %v677 = vsel %vm83, %v663, 0.0
    %v678 = vrot.slane %v677, 4
    %v679 = vadd.f32 %v677, %v678
    %v680 = vrot.slane %v679, 2
    %v681 = vadd.f32 %v679, %v680
    %v682 = vrot.slane %v681, 1
    %v683 = vadd.f32 %v681, %v682
    %v684 = vsel %vm83, %v664, 0.0
    %v685 = vrot.slane %v684, 4
    %v686 = vadd.f32 %v684, %v685
    %v687 = vrot.slane %v686, 2
    %v688 = vadd.f32 %v686, %v687
    %v689 = vrot.slane %v688, 1
    %v690 = vadd.f32 %v688, %v689
    %v691 = vsel %vm83, %v665, 0.0
    %v692 = vrot.slane %v691, 4
    %v693 = vadd.f32 %v691, %v692
    %v694 = vrot.slane %v693, 2
    %v695 = vadd.f32 %v693, %v694
    %v696 = vrot.slane %v695, 1
    %v697 = vadd.f32 %v695, %v696
    %v698 = vsel %vm83, %v666, 0.0
    %v699 = vrot.slane %v698, 4
    %v700 = vadd.f32 %v698, %v699
    %v701 = vrot.slane %v700, 2
    %v702 = vadd.f32 %v700, %v701
    %v703 = vrot.slane %v702, 1
    %v704 = vadd.f32 %v702, %v703
    %v705 = vsel %vm83, %v667, 0.0
    %v706 = vrot.slane %v705, 4
    %v707 = vadd.f32 %v705, %v706
    %v708 = vrot.slane %v707, 2
    %v709 = vadd.f32 %v707, %v708
    %v710 = vrot.slane %v709, 1
    %v711 = vadd.f32 %v709, %v710
    %v712 = vsel %vm83, %v668, 0.0
    %v713 = vrot.slane %v712, 4
    %v714 = vadd.f32 %v712, %v713
    %v715 = vrot.slane %v714, 2
    %v716 = vadd.f32 %v714, %v715
    %v717 = vrot.slane %v716, 1
    %v718 = vadd.f32 %v716, %v717
    %v719 = vsel %vm83, %v669, 0.0
    %v720 = vrot.slane %v719, 4
    %v721 = vadd.f32 %v719, %v720
    %v722 = vrot.slane %v721, 2
    %v723 = vadd.f32 %v721, %v722
    %v724 = vrot.slane %v723, 1
    %v725 = vadd.f32 %v723, %v724
    %s726 = scalar_lea.vmem %s2, 224
    %v727 = vld [vmem:[%s726] sm:$0xff]
    %v728 = vld [vmem:[%s726 + $0x8] sm:$0xff]
    %v729 = vld [vmem:[%s726 + $0x10] sm:$0xff]
    %v730 = vld [vmem:[%s726 + $0x18] sm:$0xff]
    %v731 = vld [vmem:[%s726 + $0x20] sm:$0xff]
    %v732 = vld [vmem:[%s726 + $0x28] sm:$0xff]
    %v733 = vld [vmem:[%s726 + $0x30] sm:$0x3]
    %v742 = vsel %vm259, %v683, %v676
    %v743 = vsel %vm261, %v690, %v742
    %v744 = vsel %vm263, %v697, %v743
    %v745 = vsel %vm265, %v704, %v744
    %v746 = vsel %vm267, %v711, %v745
    %v747 = vsel %vm269, %v718, %v746
    %v748 = vsel %vm271, %v725, %v747
    %v749 = vsel %vm273, %v748, 0
    %v752 = vsel %vm276, %v733, 0
    %754 = vmatpush.msra.mxu0 0.0
    %755 = vmatpush.msra.mxu0 0.0
    %756 = vmatpush.msra.mxu0 0.0
    %757 = vmatpush.msra.mxu0 0.0
    %758 = vmatpush.msra.mxu0 0.0
    %759 = vmatpush.msra.mxu0 0.0
    %760 = vmatpush.msra.mxu0 0.0
    %761 = vmatpush.msra.mxu0 0.0
    %762 = vmatpush.msra.mxu0 0.0
    %763 = vmatpush.msra.mxu0 %v752
    %764 = vmatpush.msra.mxu0 %v732
    %765 = vmatpush.msra.mxu0 %v731
    %766 = vmatpush.msra.mxu0 %v730
    %767 = vmatpush.msra.mxu0 %v729
    %768 = vmatpush.msra.mxu0 %v728
    %769 = vmatpush.msra.mxu0 %v727
    %770 = vmatmul.f32.gmra.mxu0 %v749
    %v771 = vpop.f32.mrf.mxu0
    %v772 = vadd.f32 0.0, %v771
    %773 = vdwg.mxu0
    %v774 = vadd.f32 %v629, %v772
    %775 = vset.pattern.permute.xlu0 5
    %776 = vperm.xlu0 %775, %v33
    %v777 = vpop.permute.xlu0 %776
    %778 = vset.pattern.permute.xlu0 5
    %779 = vperm.xlu0 %778, %v34
    %v780 = vpop.permute.xlu0 %779
    %781 = vset.pattern.permute.xlu0 5
    %782 = vperm.xlu0 %781, %v35
    %v783 = vpop.permute.xlu0 %782
    %784 = vset.pattern.permute.xlu0 5
    %785 = vperm.xlu0 %784, %v36
    %v786 = vpop.permute.xlu0 %785
    %787 = vset.pattern.permute.xlu0 5
    %788 = vperm.xlu0 %787, %v37
    %v789 = vpop.permute.xlu0 %788
    %790 = vset.pattern.permute.xlu0 5
    %791 = vperm.xlu0 %790, %v38
    %v792 = vpop.permute.xlu0 %791
    %793 = vset.pattern.permute.xlu0 5
    %794 = vperm.xlu0 %793, %v39
    %v795 = vpop.permute.xlu0 %794
    %796 = vset.pattern.permute.xlu0 5
    %797 = vperm.xlu0 %796, %v40
    %v798 = vpop.permute.xlu0 %797
    %vm799 = vcmp.eq.s32.totalorder %v777, %v42
    %vm800 = vcmp.eq.s32.totalorder %v780, %v42
    %vm801 = vcmp.eq.s32.totalorder %v783, %v42
    %vm802 = vcmp.eq.s32.totalorder %v786, %v42
    %vm803 = vcmp.eq.s32.totalorder %v789, %v42
    %vm804 = vcmp.eq.s32.totalorder %v792, %v42
    %vm805 = vcmp.eq.s32.totalorder %v795, %v42
    %vm806 = vcmp.eq.s32.totalorder %v798, %v42
    %v807 = vsel %vm799, 1.0, 0.0
    %v808 = vsel %vm800, 1.0, 0.0
    %v809 = vsel %vm801, 1.0, 0.0
    %v810 = vsel %vm802, 1.0, 0.0
    %v811 = vsel %vm803, 1.0, 0.0
    %v812 = vsel %vm804, 1.0, 0.0
    %v813 = vsel %vm805, 1.0, 0.0
    %v814 = vsel %vm806, 1.0, 0.0
    %v815 = vsel %vm83, %v807, 0.0
    %v816 = vrot.slane %v815, 4
    %v817 = vadd.f32 %v815, %v816
    %v818 = vrot.slane %v817, 2
    %v819 = vadd.f32 %v817, %v818
    %v820 = vrot.slane %v819, 1
    %v821 = vadd.f32 %v819, %v820
    %v822 = vsel %vm83, %v808, 0.0
    %v823 = vrot.slane %v822, 4
    %v824 = vadd.f32 %v822, %v823
    %v825 = vrot.slane %v824, 2
    %v826 = vadd.f32 %v824, %v825
    %v827 = vrot.slane %v826, 1
    %v828 = vadd.f32 %v826, %v827
    %v829 = vsel %vm83, %v809, 0.0
    %v830 = vrot.slane %v829, 4
    %v831 = vadd.f32 %v829, %v830
    %v832 = vrot.slane %v831, 2
    %v833 = vadd.f32 %v831, %v832
    %v834 = vrot.slane %v833, 1
    %v835 = vadd.f32 %v833, %v834
    %v836 = vsel %vm83, %v810, 0.0
    %v837 = vrot.slane %v836, 4
    %v838 = vadd.f32 %v836, %v837
    %v839 = vrot.slane %v838, 2
    %v840 = vadd.f32 %v838, %v839
    %v841 = vrot.slane %v840, 1
    %v842 = vadd.f32 %v840, %v841
    %v843 = vsel %vm83, %v811, 0.0
    %v844 = vrot.slane %v843, 4
    %v845 = vadd.f32 %v843, %v844
    %v846 = vrot.slane %v845, 2
    %v847 = vadd.f32 %v845, %v846
    %v848 = vrot.slane %v847, 1
    %v849 = vadd.f32 %v847, %v848
    %v850 = vsel %vm83, %v812, 0.0
    %v851 = vrot.slane %v850, 4
    %v852 = vadd.f32 %v850, %v851
    %v853 = vrot.slane %v852, 2
    %v854 = vadd.f32 %v852, %v853
    %v855 = vrot.slane %v854, 1
    %v856 = vadd.f32 %v854, %v855
    %v857 = vsel %vm83, %v813, 0.0
    %v858 = vrot.slane %v857, 4
    %v859 = vadd.f32 %v857, %v858
    %v860 = vrot.slane %v859, 2
    %v861 = vadd.f32 %v859, %v860
    %v862 = vrot.slane %v861, 1
    %v863 = vadd.f32 %v861, %v862
    %v864 = vsel %vm83, %v814, 0.0
    %v865 = vrot.slane %v864, 4
    %v866 = vadd.f32 %v864, %v865
    %v867 = vrot.slane %v866, 2
    %v868 = vadd.f32 %v866, %v867
    %v869 = vrot.slane %v868, 1
    %v870 = vadd.f32 %v868, %v869
    %s871 = scalar_lea.vmem %s2, 280
    %v872 = vld [vmem:[%s871] sm:$0xff]
    %v873 = vld [vmem:[%s871 + $0x8] sm:$0xff]
    %v874 = vld [vmem:[%s871 + $0x10] sm:$0xff]
    %v875 = vld [vmem:[%s871 + $0x18] sm:$0xff]
    %v876 = vld [vmem:[%s871 + $0x20] sm:$0xff]
    %v877 = vld [vmem:[%s871 + $0x28] sm:$0xff]
    %v878 = vld [vmem:[%s871 + $0x30] sm:$0x3]
    %v887 = vsel %vm259, %v828, %v821
    %v888 = vsel %vm261, %v835, %v887
    %v889 = vsel %vm263, %v842, %v888
    %v890 = vsel %vm265, %v849, %v889
    %v891 = vsel %vm267, %v856, %v890
    %v892 = vsel %vm269, %v863, %v891
    %v893 = vsel %vm271, %v870, %v892
    %v894 = vsel %vm273, %v893, 0
    %v897 = vsel %vm276, %v878, 0
    %899 = vmatpush.msra.mxu0 0.0
    %900 = vmatpush.msra.mxu0 0.0
    %901 = vmatpush.msra.mxu0 0.0
    %902 = vmatpush.msra.mxu0 0.0
    %903 = vmatpush.msra.mxu0 0.0
    %904 = vmatpush.msra.mxu0 0.0
    %905 = vmatpush.msra.mxu0 0.0
    %906 = vmatpush.msra.mxu0 0.0
    %907 = vmatpush.msra.mxu0 0.0
    %908 = vmatpush.msra.mxu0 %v897
    %909 = vmatpush.msra.mxu0 %v877
    %910 = vmatpush.msra.mxu0 %v876
    %911 = vmatpush.msra.mxu0 %v875
    %912 = vmatpush.msra.mxu0 %v874
    %913 = vmatpush.msra.mxu0 %v873
    %914 = vmatpush.msra.mxu0 %v872
    %915 = vmatmul.f32.gmra.mxu0 %v894
    %v916 = vpop.f32.mrf.mxu0
    %v917 = vadd.f32 0.0, %v916
    %918 = vdwg.mxu0
    %v919 = vadd.f32 %v774, %v917
    %920 = vset.pattern.permute.xlu0 6
    %921 = vperm.xlu0 %920, %v33
    %v922 = vpop.permute.xlu0 %921
    %923 = vset.pattern.permute.xlu0 6
    %924 = vperm.xlu0 %923, %v34
    %v925 = vpop.permute.xlu0 %924
    %926 = vset.pattern.permute.xlu0 6
    %927 = vperm.xlu0 %926, %v35
    %v928 = vpop.permute.xlu0 %927
    %929 = vset.pattern.permute.xlu0 6
    %930 = vperm.xlu0 %929, %v36
    %v931 = vpop.permute.xlu0 %930
    %932 = vset.pattern.permute.xlu0 6
    %933 = vperm.xlu0 %932, %v37
    %v934 = vpop.permute.xlu0 %933
    %935 = vset.pattern.permute.xlu0 6
    %936 = vperm.xlu0 %935, %v38
    %v937 = vpop.permute.xlu0 %936
    %938 = vset.pattern.permute.xlu0 6
    %939 = vperm.xlu0 %938, %v39
    %v940 = vpop.permute.xlu0 %939
    %941 = vset.pattern.permute.xlu0 6
    %942 = vperm.xlu0 %941, %v40
    %v943 = vpop.permute.xlu0 %942
    %vm944 = vcmp.eq.s32.totalorder %v922, %v42
    %vm945 = vcmp.eq.s32.totalorder %v925, %v42
    %vm946 = vcmp.eq.s32.totalorder %v928, %v42
    %vm947 = vcmp.eq.s32.totalorder %v931, %v42
    %vm948 = vcmp.eq.s32.totalorder %v934, %v42
    %vm949 = vcmp.eq.s32.totalorder %v937, %v42
    %vm950 = vcmp.eq.s32.totalorder %v940, %v42
    %vm951 = vcmp.eq.s32.totalorder %v943, %v42
    %v952 = vsel %vm944, 1.0, 0.0
    %v953 = vsel %vm945, 1.0, 0.0
    %v954 = vsel %vm946, 1.0, 0.0
    %v955 = vsel %vm947, 1.0, 0.0
    %v956 = vsel %vm948, 1.0, 0.0
    %v957 = vsel %vm949, 1.0, 0.0
    %v958 = vsel %vm950, 1.0, 0.0
    %v959 = vsel %vm951, 1.0, 0.0
    %v960 = vsel %vm83, %v952, 0.0
    %v961 = vrot.slane %v960, 4
    %v962 = vadd.f32 %v960, %v961
    %v963 = vrot.slane %v962, 2
    %v964 = vadd.f32 %v962, %v963
    %v965 = vrot.slane %v964, 1
    %v966 = vadd.f32 %v964, %v965
    %v967 = vsel %vm83, %v953, 0.0
    %v968 = vrot.slane %v967, 4
    %v969 = vadd.f32 %v967, %v968
    %v970 = vrot.slane %v969, 2
    %v971 = vadd.f32 %v969, %v970
    %v972 = vrot.slane %v971, 1
    %v973 = vadd.f32 %v971, %v972
    %v974 = vsel %vm83, %v954, 0.0
    %v975 = vrot.slane %v974, 4
    %v976 = vadd.f32 %v974, %v975
    %v977 = vrot.slane %v976, 2
    %v978 = vadd.f32 %v976, %v977
    %v979 = vrot.slane %v978, 1
    %v980 = vadd.f32 %v978, %v979
    %v981 = vsel %vm83, %v955, 0.0
    %v982 = vrot.slane %v981, 4
    %v983 = vadd.f32 %v981, %v982
    %v984 = vrot.slane %v983, 2
    %v985 = vadd.f32 %v983, %v984
    %v986 = vrot.slane %v985, 1
    %v987 = vadd.f32 %v985, %v986
    %v988 = vsel %vm83, %v956, 0.0
    %v989 = vrot.slane %v988, 4
    %v990 = vadd.f32 %v988, %v989
    %v991 = vrot.slane %v990, 2
    %v992 = vadd.f32 %v990, %v991
    %v993 = vrot.slane %v992, 1
    %v994 = vadd.f32 %v992, %v993
    %v995 = vsel %vm83, %v957, 0.0
    %v996 = vrot.slane %v995, 4
    %v997 = vadd.f32 %v995, %v996
    %v998 = vrot.slane %v997, 2
    %v999 = vadd.f32 %v997, %v998
    %v1000 = vrot.slane %v999, 1
    %v1001 = vadd.f32 %v999, %v1000
    %v1002 = vsel %vm83, %v958, 0.0
    %v1003 = vrot.slane %v1002, 4
    %v1004 = vadd.f32 %v1002, %v1003
    %v1005 = vrot.slane %v1004, 2
    %v1006 = vadd.f32 %v1004, %v1005
    %v1007 = vrot.slane %v1006, 1
    %v1008 = vadd.f32 %v1006, %v1007
    %v1009 = vsel %vm83, %v959, 0.0
    %v1010 = vrot.slane %v1009, 4
    %v1011 = vadd.f32 %v1009, %v1010
    %v1012 = vrot.slane %v1011, 2
    %v1013 = vadd.f32 %v1011, %v1012
    %v1014 = vrot.slane %v1013, 1
    %v1015 = vadd.f32 %v1013, %v1014
    %s1016 = scalar_lea.vmem %s2, 336
    %v1017 = vld [vmem:[%s1016] sm:$0xff]
    %v1018 = vld [vmem:[%s1016 + $0x8] sm:$0xff]
    %v1019 = vld [vmem:[%s1016 + $0x10] sm:$0xff]
    %v1020 = vld [vmem:[%s1016 + $0x18] sm:$0xff]
    %v1021 = vld [vmem:[%s1016 + $0x20] sm:$0xff]
    %v1022 = vld [vmem:[%s1016 + $0x28] sm:$0xff]
    %v1023 = vld [vmem:[%s1016 + $0x30] sm:$0x3]
    %v1032 = vsel %vm259, %v973, %v966
    %v1033 = vsel %vm261, %v980, %v1032
    %v1034 = vsel %vm263, %v987, %v1033
    %v1035 = vsel %vm265, %v994, %v1034
    %v1036 = vsel %vm267, %v1001, %v1035
    %v1037 = vsel %vm269, %v1008, %v1036
    %v1038 = vsel %vm271, %v1015, %v1037
    %v1039 = vsel %vm273, %v1038, 0
    %v1042 = vsel %vm276, %v1023, 0
    %1044 = vmatpush.msra.mxu0 0.0
    %1045 = vmatpush.msra.mxu0 0.0
    %1046 = vmatpush.msra.mxu0 0.0
    %1047 = vmatpush.msra.mxu0 0.0
    %1048 = vmatpush.msra.mxu0 0.0
    %1049 = vmatpush.msra.mxu0 0.0
    %1050 = vmatpush.msra.mxu0 0.0
    %1051 = vmatpush.msra.mxu0 0.0
    %1052 = vmatpush.msra.mxu0 0.0
    %1053 = vmatpush.msra.mxu0 %v1042
    %1054 = vmatpush.msra.mxu0 %v1022
    %1055 = vmatpush.msra.mxu0 %v1021
    %1056 = vmatpush.msra.mxu0 %v1020
    %1057 = vmatpush.msra.mxu0 %v1019
    %1058 = vmatpush.msra.mxu0 %v1018
    %1059 = vmatpush.msra.mxu0 %v1017
    %1060 = vmatmul.f32.gmra.mxu0 %v1039
    %v1061 = vpop.f32.mrf.mxu0
    %v1062 = vadd.f32 0.0, %v1061
    %1063 = vdwg.mxu0
    %v1064 = vadd.f32 %v919, %v1062
    %1065 = vset.pattern.permute.xlu0 7
    %1066 = vperm.xlu0 %1065, %v33
    %v1067 = vpop.permute.xlu0 %1066
    %1068 = vset.pattern.permute.xlu0 7
    %1069 = vperm.xlu0 %1068, %v34
    %v1070 = vpop.permute.xlu0 %1069
    %1071 = vset.pattern.permute.xlu0 7
    %1072 = vperm.xlu0 %1071, %v35
    %v1073 = vpop.permute.xlu0 %1072
    %1074 = vset.pattern.permute.xlu0 7
    %1075 = vperm.xlu0 %1074, %v36
    %v1076 = vpop.permute.xlu0 %1075
    %1077 = vset.pattern.permute.xlu0 7
    %1078 = vperm.xlu0 %1077, %v37
    %v1079 = vpop.permute.xlu0 %1078
    %1080 = vset.pattern.permute.xlu0 7
    %1081 = vperm.xlu0 %1080, %v38
    %v1082 = vpop.permute.xlu0 %1081
    %1083 = vset.pattern.permute.xlu0 7
    %1084 = vperm.xlu0 %1083, %v39
    %v1085 = vpop.permute.xlu0 %1084
    %1086 = vset.pattern.permute.xlu0 7
    %1087 = vperm.xlu0 %1086, %v40
    %v1088 = vpop.permute.xlu0 %1087
    %vm1089 = vcmp.eq.s32.totalorder %v1067, %v42
    %vm1090 = vcmp.eq.s32.totalorder %v1070, %v42
    %vm1091 = vcmp.eq.s32.totalorder %v1073, %v42
    %vm1092 = vcmp.eq.s32.totalorder %v1076, %v42
    %vm1093 = vcmp.eq.s32.totalorder %v1079, %v42
    %vm1094 = vcmp.eq.s32.totalorder %v1082, %v42
    %vm1095 = vcmp.eq.s32.totalorder %v1085, %v42
    %vm1096 = vcmp.eq.s32.totalorder %v1088, %v42
    %v1097 = vsel %vm1089, 1.0, 0.0
    %v1098 = vsel %vm1090, 1.0, 0.0
    %v1099 = vsel %vm1091, 1.0, 0.0
    %v1100 = vsel %vm1092, 1.0, 0.0
    %v1101 = vsel %vm1093, 1.0, 0.0
    %v1102 = vsel %vm1094, 1.0, 0.0
    %v1103 = vsel %vm1095, 1.0, 0.0
    %v1104 = vsel %vm1096, 1.0, 0.0
    %v1105 = vsel %vm83, %v1097, 0.0
    %v1106 = vrot.slane %v1105, 4
    %v1107 = vadd.f32 %v1105, %v1106
    %v1108 = vrot.slane %v1107, 2
    %v1109 = vadd.f32 %v1107, %v1108
    %v1110 = vrot.slane %v1109, 1
    %v1111 = vadd.f32 %v1109, %v1110
    %v1112 = vsel %vm83, %v1098, 0.0
    %v1113 = vrot.slane %v1112, 4
    %v1114 = vadd.f32 %v1112, %v1113
    %v1115 = vrot.slane %v1114, 2
    %v1116 = vadd.f32 %v1114, %v1115
    %v1117 = vrot.slane %v1116, 1
    %v1118 = vadd.f32 %v1116, %v1117
    %v1119 = vsel %vm83, %v1099, 0.0
    %v1120 = vrot.slane %v1119, 4
    %v1121 = vadd.f32 %v1119, %v1120
    %v1122 = vrot.slane %v1121, 2
    %v1123 = vadd.f32 %v1121, %v1122
    %v1124 = vrot.slane %v1123, 1
    %v1125 = vadd.f32 %v1123, %v1124
    %v1126 = vsel %vm83, %v1100, 0.0
    %v1127 = vrot.slane %v1126, 4
    %v1128 = vadd.f32 %v1126, %v1127
    %v1129 = vrot.slane %v1128, 2
    %v1130 = vadd.f32 %v1128, %v1129
    %v1131 = vrot.slane %v1130, 1
    %v1132 = vadd.f32 %v1130, %v1131
    %v1133 = vsel %vm83, %v1101, 0.0
    %v1134 = vrot.slane %v1133, 4
    %v1135 = vadd.f32 %v1133, %v1134
    %v1136 = vrot.slane %v1135, 2
    %v1137 = vadd.f32 %v1135, %v1136
    %v1138 = vrot.slane %v1137, 1
    %v1139 = vadd.f32 %v1137, %v1138
    %v1140 = vsel %vm83, %v1102, 0.0
    %v1141 = vrot.slane %v1140, 4
    %v1142 = vadd.f32 %v1140, %v1141
    %v1143 = vrot.slane %v1142, 2
    %v1144 = vadd.f32 %v1142, %v1143
    %v1145 = vrot.slane %v1144, 1
    %v1146 = vadd.f32 %v1144, %v1145
    %v1147 = vsel %vm83, %v1103, 0.0
    %v1148 = vrot.slane %v1147, 4
    %v1149 = vadd.f32 %v1147, %v1148
    %v1150 = vrot.slane %v1149, 2
    %v1151 = vadd.f32 %v1149, %v1150
    %v1152 = vrot.slane %v1151, 1
    %v1153 = vadd.f32 %v1151, %v1152
    %v1154 = vsel %vm83, %v1104, 0.0
    %v1155 = vrot.slane %v1154, 4
    %v1156 = vadd.f32 %v1154, %v1155
    %v1157 = vrot.slane %v1156, 2
    %v1158 = vadd.f32 %v1156, %v1157
    %v1159 = vrot.slane %v1158, 1
    %v1160 = vadd.f32 %v1158, %v1159
    %s1161 = scalar_lea.vmem %s2, 392
    %v1162 = vld [vmem:[%s1161] sm:$0xff]
    %v1163 = vld [vmem:[%s1161 + $0x8] sm:$0xff]
    %v1164 = vld [vmem:[%s1161 + $0x10] sm:$0xff]
    %v1165 = vld [vmem:[%s1161 + $0x18] sm:$0xff]
    %v1166 = vld [vmem:[%s1161 + $0x20] sm:$0xff]
    %v1167 = vld [vmem:[%s1161 + $0x28] sm:$0xff]
    %v1168 = vld [vmem:[%s1161 + $0x30] sm:$0x3]
    %v1177 = vsel %vm259, %v1118, %v1111
    %v1178 = vsel %vm261, %v1125, %v1177
    %v1179 = vsel %vm263, %v1132, %v1178
    %v1180 = vsel %vm265, %v1139, %v1179
    %v1181 = vsel %vm267, %v1146, %v1180
    %v1182 = vsel %vm269, %v1153, %v1181
    %v1183 = vsel %vm271, %v1160, %v1182
    %v1184 = vsel %vm273, %v1183, 0
    %v1187 = vsel %vm276, %v1168, 0
    %1189 = vmatpush.msra.mxu0 0.0
    %1190 = vmatpush.msra.mxu0 0.0
    %1191 = vmatpush.msra.mxu0 0.0
    %1192 = vmatpush.msra.mxu0 0.0
    %1193 = vmatpush.msra.mxu0 0.0
    %1194 = vmatpush.msra.mxu0 0.0
    %1195 = vmatpush.msra.mxu0 0.0
    %1196 = vmatpush.msra.mxu0 0.0
    %1197 = vmatpush.msra.mxu0 0.0
    %1198 = vmatpush.msra.mxu0 %v1187
    %1199 = vmatpush.msra.mxu0 %v1167
    %1200 = vmatpush.msra.mxu0 %v1166
    %1201 = vmatpush.msra.mxu0 %v1165
    %1202 = vmatpush.msra.mxu0 %v1164
    %1203 = vmatpush.msra.mxu0 %v1163
    %1204 = vmatpush.msra.mxu0 %v1162
    %1205 = vmatmul.f32.gmra.mxu0 %v1184
    %v1206 = vpop.f32.mrf.mxu0
    %v1207 = vadd.f32 0.0, %v1206
    %1208 = vdwg.mxu0
    %v1209 = vadd.f32 %v1064, %v1207
    %v1210 = vmul.f32 %v1209, 0.25
    %v1211 = vld [vmem:[%s3] sm:$0x1]
    %v1213 = vperm.slane %v1211, 0
    %v1215 = vadd.f32 %v1210, %v1213
    %v1216 = vmax.f32 %v1215, 0.0
    %v1217 = vld [vmem:[%s1] sm:$0xff]
    %v1218 = vld [vmem:[%s1 + $0x8] sm:$0xff]
    %v1219 = vld [vmem:[%s1 + $0x10] sm:$0xff]
    %v1220 = vld [vmem:[%s1 + $0x18] sm:$0xff]
    %v1221 = vld [vmem:[%s1 + $0x20] sm:$0xff]
    %v1222 = vld [vmem:[%s1 + $0x28] sm:$0xff]
    %v1223 = vld [vmem:[%s1 + $0x30] sm:$0xff]
    %v1224 = vld [vmem:[%s1 + $0x38] sm:$0xff]
    %1225 = vset.pattern.permute.xlu0 0
    %1226 = vperm.xlu0 %1225, %v1217
    %v1227 = vpop.permute.xlu0 %1226
    %1228 = vset.pattern.permute.xlu0 0
    %1229 = vperm.xlu0 %1228, %v1218
    %v1230 = vpop.permute.xlu0 %1229
    %1231 = vset.pattern.permute.xlu0 0
    %1232 = vperm.xlu0 %1231, %v1219
    %v1233 = vpop.permute.xlu0 %1232
    %1234 = vset.pattern.permute.xlu0 0
    %1235 = vperm.xlu0 %1234, %v1220
    %v1236 = vpop.permute.xlu0 %1235
    %1237 = vset.pattern.permute.xlu0 0
    %1238 = vperm.xlu0 %1237, %v1221
    %v1239 = vpop.permute.xlu0 %1238
    %1240 = vset.pattern.permute.xlu0 0
    %1241 = vperm.xlu0 %1240, %v1222
    %v1242 = vpop.permute.xlu0 %1241
    %1243 = vset.pattern.permute.xlu0 0
    %1244 = vperm.xlu0 %1243, %v1223
    %v1245 = vpop.permute.xlu0 %1244
    %1246 = vset.pattern.permute.xlu0 0
    %1247 = vperm.xlu0 %1246, %v1224
    %v1248 = vpop.permute.xlu0 %1247
    %vm1249 = vcmp.eq.s32.totalorder %v1227, %v42
    %vm1250 = vcmp.eq.s32.totalorder %v1230, %v42
    %vm1251 = vcmp.eq.s32.totalorder %v1233, %v42
    %vm1252 = vcmp.eq.s32.totalorder %v1236, %v42
    %vm1253 = vcmp.eq.s32.totalorder %v1239, %v42
    %vm1254 = vcmp.eq.s32.totalorder %v1242, %v42
    %vm1255 = vcmp.eq.s32.totalorder %v1245, %v42
    %vm1256 = vcmp.eq.s32.totalorder %v1248, %v42
    %v1257 = vsel %vm1249, 1.0, 0.0
    %v1258 = vsel %vm1250, 1.0, 0.0
    %v1259 = vsel %vm1251, 1.0, 0.0
    %v1260 = vsel %vm1252, 1.0, 0.0
    %v1261 = vsel %vm1253, 1.0, 0.0
    %v1262 = vsel %vm1254, 1.0, 0.0
    %v1263 = vsel %vm1255, 1.0, 0.0
    %v1264 = vsel %vm1256, 1.0, 0.0
    %v1265 = vsel %vm273, %v1257, 0.0
    %v1266 = vrot.slane %v1265, 4
    %v1267 = vadd.f32 %v1265, %v1266
    %v1268 = vrot.slane %v1267, 2
    %v1269 = vadd.f32 %v1267, %v1268
    %v1270 = vrot.slane %v1269, 1
    %v1271 = vadd.f32 %v1269, %v1270
    %v1272 = vsel %vm273, %v1258, 0.0
    %v1273 = vrot.slane %v1272, 4
    %v1274 = vadd.f32 %v1272, %v1273
    %v1275 = vrot.slane %v1274, 2
    %v1276 = vadd.f32 %v1274, %v1275
    %v1277 = vrot.slane %v1276, 1
    %v1278 = vadd.f32 %v1276, %v1277
    %v1279 = vsel %vm273, %v1259, 0.0
    %v1280 = vrot.slane %v1279, 4
    %v1281 = vadd.f32 %v1279, %v1280
    %v1282 = vrot.slane %v1281, 2
    %v1283 = vadd.f32 %v1281, %v1282
    %v1284 = vrot.slane %v1283, 1
    %v1285 = vadd.f32 %v1283, %v1284
    %v1286 = vsel %vm273, %v1260, 0.0
    %v1287 = vrot.slane %v1286, 4
    %v1288 = vadd.f32 %v1286, %v1287
    %v1289 = vrot.slane %v1288, 2
    %v1290 = vadd.f32 %v1288, %v1289
    %v1291 = vrot.slane %v1290, 1
    %v1292 = vadd.f32 %v1290, %v1291
    %v1293 = vsel %vm273, %v1261, 0.0
    %v1294 = vrot.slane %v1293, 4
    %v1295 = vadd.f32 %v1293, %v1294
    %v1296 = vrot.slane %v1295, 2
    %v1297 = vadd.f32 %v1295, %v1296
    %v1298 = vrot.slane %v1297, 1
    %v1299 = vadd.f32 %v1297, %v1298
    %v1300 = vsel %vm273, %v1262, 0.0
    %v1301 = vrot.slane %v1300, 4
    %v1302 = vadd.f32 %v1300, %v1301
    %v1303 = vrot.slane %v1302, 2
    %v1304 = vadd.f32 %v1302, %v1303
    %v1305 = vrot.slane %v1304, 1
    %v1306 = vadd.f32 %v1304, %v1305
    %v1307 = vsel %vm273, %v1263, 0.0
    %v1308 = vrot.slane %v1307, 4
    %v1309 = vadd.f32 %v1307, %v1308
    %v1310 = vrot.slane %v1309, 2
    %v1311 = vadd.f32 %v1309, %v1310
    %v1312 = vrot.slane %v1311, 1
    %v1313 = vadd.f32 %v1311, %v1312
    %v1314 = vsel %vm273, %v1264, 0.0
    %v1315 = vrot.slane %v1314, 4
    %v1316 = vadd.f32 %v1314, %v1315
    %v1317 = vrot.slane %v1316, 2
    %v1318 = vadd.f32 %v1316, %v1317
    %v1319 = vrot.slane %v1318, 1
    %v1320 = vadd.f32 %v1318, %v1319
    %v1321 = vld [vmem:[%s4] sm:$0xff]
    %v1322 = vld [vmem:[%s4 + $0x8] sm:$0xff]
    %v1323 = vld [vmem:[%s4 + $0x10] sm:$0xff]
    %v1324 = vld [vmem:[%s4 + $0x18] sm:$0xff]
    %v1325 = vld [vmem:[%s4 + $0x20] sm:$0xff]
    %v1326 = vld [vmem:[%s4 + $0x28] sm:$0xff]
    %v1327 = vld [vmem:[%s4 + $0x30] sm:$0x3]
    %v1336 = vsel %vm259, %v1278, %v1271
    %v1337 = vsel %vm261, %v1285, %v1336
    %v1338 = vsel %vm263, %v1292, %v1337
    %v1339 = vsel %vm265, %v1299, %v1338
    %v1340 = vsel %vm267, %v1306, %v1339
    %v1341 = vsel %vm269, %v1313, %v1340
    %v1342 = vsel %vm271, %v1320, %v1341
    %v1343 = vsel %vm273, %v1342, 0
    %v1346 = vsel %vm276, %v1327, 0
    %1348 = vmatpush.msra.mxu0 0.0
    %1349 = vmatpush.msra.mxu0 0.0
    %1350 = vmatpush.msra.mxu0 0.0
    %1351 = vmatpush.msra.mxu0 0.0
    %1352 = vmatpush.msra.mxu0 0.0
    %1353 = vmatpush.msra.mxu0 0.0
    %1354 = vmatpush.msra.mxu0 0.0
    %1355 = vmatpush.msra.mxu0 0.0
    %1356 = vmatpush.msra.mxu0 0.0
    %1357 = vmatpush.msra.mxu0 %v1346
    %1358 = vmatpush.msra.mxu0 %v1326
    %1359 = vmatpush.msra.mxu0 %v1325
    %1360 = vmatpush.msra.mxu0 %v1324
    %1361 = vmatpush.msra.mxu0 %v1323
    %1362 = vmatpush.msra.mxu0 %v1322
    %1363 = vmatpush.msra.mxu0 %v1321
    %1364 = vmatmul.f32.gmra.mxu0 %v1343
    %v1365 = vpop.f32.mrf.mxu0
    %v1366 = vadd.f32 0.0, %v1365
    %1367 = vdwg.mxu0
    %v1368 = vmul.f32 %v1366, 0.125
    %v1369 = vld [vmem:[%s5] sm:$0xff]
    %vm1370 = vcmask 64512
    %v1372 = vsel %vm1370, %v1216, 0
    %1374 = vmatpush.msra.mxu0 0.0
    %1375 = vmatpush.msra.mxu0 0.0
    %1376 = vmatpush.msra.mxu0 0.0
    %1377 = vmatpush.msra.mxu0 0.0
    %1378 = vmatpush.msra.mxu0 0.0
    %1379 = vmatpush.msra.mxu0 0.0
    %1380 = vmatpush.msra.mxu0 0.0
    %1381 = vmatpush.msra.mxu0 0.0
    %1382 = vmatpush.msra.mxu0 0.0
    %1383 = vmatpush.msra.mxu0 0.0
    %1384 = vmatpush.msra.mxu0 0.0
    %1385 = vmatpush.msra.mxu0 0.0
    %1386 = vmatpush.msra.mxu0 0.0
    %1387 = vmatpush.msra.mxu0 0.0
    %1388 = vmatpush.msra.mxu0 0.0
    %1389 = vmatpush.msra.mxu0 %v1369
    %1390 = vmatmul.f32.gmra.mxu0 %v1372
    %v1391 = vpop.f32.mrf.mxu0
    %v1392 = vadd.f32 0.0, %v1391
    %1393 = vdwg.mxu0
    %v1394 = vadd.f32 %v1368, %v1392
    %v1395 = vld [vmem:[%s6] sm:$0x1]
    %v1397 = vperm.slane %v1395, 0
    %v1399 = vadd.f32 %v1394, %v1397
    %v1400 = vmax.f32 %v1399, 0.0
    %v1401 = vld [vmem:[%s7] sm:$0xff]
    %v1402 = vld [vmem:[%s7 + $0x8] sm:$0xff]
    %v1403 = vld [vmem:[%s7 + $0x10] sm:$0xff]
    %v1404 = vld [vmem:[%s7 + $0x18] sm:$0xff]
    %v1405 = vld [vmem:[%s8] sm:$0x1]
    %v1407 = vperm.slane %v1405, 0
    %vm1409 = vcmask 261120
    %v1411 = vsel %vm1409, %v1400, 0
    %1413 = vmatpush.msra.mxu0 0.0
    %1414 = vmatpush.msra.mxu0 0.0
    %1415 = vmatpush.msra.mxu0 0.0
    %1416 = vmatpush.msra.mxu0 0.0
    %1417 = vmatpush.msra.mxu0 0.0
    %1418 = vmatpush.msra.mxu0 0.0
    %1419 = vmatpush.msra.mxu0 0.0
    %1420 = vmatpush.msra.mxu0 0.0
    %1421 = vmatpush.msra.mxu0 0.0
    %1422 = vmatpush.msra.mxu0 0.0
    %1423 = vmatpush.msra.mxu0 0.0
    %1424 = vmatpush.msra.mxu0 0.0
    %1425 = vmatpush.msra.mxu0 %v1404
    %1426 = vmatpush.msra.mxu0 %v1403
    %1427 = vmatpush.msra.mxu0 %v1402
    %1428 = vmatpush.msra.mxu0 %v1401
    %1429 = vmatmul.f32.gmra.mxu0 %v1411
    %v1430 = vpop.f32.mrf.mxu0
    %v1431 = vadd.f32 %v1407, %v1430
    %1432 = vdwg.mxu0
    %1433 = vst [vmem:[#allocation2] sm:$0xff] %v1431
    // Predicated region
    $region38: #{tpu_custom_call.1} parent=1 // pred_check
      _
    $region39: #{tpu_custom_call.1} parent=1 // pred_check_branch
      %1435 = sbr.rel (0) target = $region41
    $region40: #{tpu_custom_call.1} parent=1 // pred_region
      %1437 = vsyncadd [#allocation3], 0
      %s1439 = sshll.u32 [#allocation2], 4
      %s1440 = int_to_ptr.vmem [resolvable:$true] %s1439
      %s1441 = sshll.u32 %s9, 4
      %s1442 = int_to_ptr.hbm [resolvable:$true] %s1441
      %1444 = dma.vmem_to_hbm [thread:$0]  %s1440, 128, %s1442, [#allocation3]
    $region41: #{tpu_custom_call.1} parent=1 // pred_fallthru
      _
    // Predicated region
    $region42: #{tpu_custom_call.1} parent=1 // pred_check
      _
    $region43: #{tpu_custom_call.1} parent=1 // pred_check_branch
      %1446 = sbr.rel (0) target = $region45
    $region44: #{tpu_custom_call.1} parent=1 // pred_region
      %1448 = dma.done [#allocation3], 128
    $region45: #{tpu_custom_call.1} parent=1 // pred_fallthru
      _
    %1449 = vsyncpa [#allocation3], 1

</llo_original>
